<compile_context>
chip_gen: v7x
topology: tpu7x:2x2x1
jax: 0.10.0
libtpu: 0.0.40
codegen_flags: <defaults>
</compile_context>

<pallas_src>
import functools

import jax
import jax.numpy as jnp
from jax.experimental import pallas as pl
from jax.experimental.pallas import tpu as pltpu


# ---------------------------------------------------------------------------
# Kernel 1: fused Q/K/V projection — one (S, D) x (D, 3D) matmul per batch.
# ---------------------------------------------------------------------------
def _qkv_proj_kernel(x_ref, w_ref, b_ref, q_ref, k_ref, v_ref, *, d_model):
    x = x_ref[...]                                                     # (S, D)
    qkv = jnp.dot(x, w_ref[...], preferred_element_type=jnp.float32)  # (S, 3D)
    qkv = qkv + b_ref[...]
    qkv = qkv.astype(q_ref.dtype)
    q_ref[...] = qkv[:, 0:d_model]
    k_ref[...] = qkv[:, d_model:2 * d_model]
    v_ref[...] = qkv[:, 2 * d_model:3 * d_model]


# ---------------------------------------------------------------------------
# Kernel 2: attention for ALL heads of one batch per grid step.
# Inputs are (H, S, Dh) blocks; output is written directly in merged (S, D)
# layout (head h occupies columns [h*Dh, (h+1)*Dh)), so no XLA transpose is
# needed afterwards.
# ---------------------------------------------------------------------------
def _attn_kernel(q_ref, k_ref, v_ref, o_ref, *, num_heads, head_dim):
    # NOTE: reference divides scores by d_k, NOT sqrt(d_k). Folding the scale
    # into Q is exact for power-of-two head dims and touches S*Dh elements
    # instead of S*S.
    scale = 1.0 / float(head_dim)
    q = q_ref[...].astype(jnp.float32) * scale                         # (H,S,Dh)
    k = k_ref[...].astype(jnp.float32)
    v = v_ref[...].astype(jnp.float32)

    # Batched QK^T without materializing k.T (contract last dims directly).
    s = jnp.einsum("hqd,hkd->hqk", q, k,
                   preferred_element_type=jnp.float32)                 # (H,S,S)
    m = jnp.max(s, axis=-1, keepdims=True)
    p = jnp.exp(s - m)
    denom = jnp.sum(p, axis=-1, keepdims=True)
    # Divide -> multiply by EUP approximate reciprocal (frees VPU slots).
    attn = p * pl.reciprocal(denom, approx=True)
    o = jnp.einsum("hqk,hkd->hqd", attn, v,
                   preferred_element_type=jnp.float32)                 # (H,S,Dh)

    # Merge heads into the final (S, D) layout with a single lane-dense store.
    merged = jnp.concatenate([o[h] for h in range(num_heads)], axis=-1)
    o_ref[...] = merged.astype(o_ref.dtype)


# ---------------------------------------------------------------------------
# Wrapper
# ---------------------------------------------------------------------------
def multi_head_attention(x, params, num_heads):
    B, S, D = x.shape
    assert D % num_heads == 0
    Dh = D // num_heads
    dtype = x.dtype
    itemsize = jnp.dtype(dtype).itemsize

    # Fuse the three projection weights into one (D, 3D) matrix.
    # Module quirk: V is projected with WO / bo.
    w_qkv = jnp.concatenate(
        [params["wq"].T, params["wk"].T, params["wo"].T], axis=1).astype(dtype)
    b_qkv = jnp.concatenate(
        [params["bq"], params["bk"], params["bo"]]).reshape(1, 3 * D).astype(jnp.float32)

    # ---------------- projection call ----------------
    x_spec = pl.BlockSpec((None, S, D), lambda b: (b, 0, 0))
    w_spec = pl.BlockSpec((D, 3 * D), lambda b: (0, 0))
    bias_spec = pl.BlockSpec((1, 3 * D), lambda b: (0, 0))
    qkv_out_spec = pl.BlockSpec((None, S, D), lambda b: (b, 0, 0))

    proj_cost = pl.CostEstimate(
        flops=2 * B * S * D * (3 * D),
        transcendentals=0,
        bytes_accessed=(B * S * D + D * 3 * D + 3 * D + 3 * B * S * D) * itemsize,
    )

    q2d, k2d, v2d = pl.pallas_call(
        functools.partial(_qkv_proj_kernel, d_model=D),
        out_shape=tuple(jax.ShapeDtypeStruct((B, S, D), dtype) for _ in range(3)),
        grid_spec=pltpu.PrefetchScalarGridSpec(
            num_scalar_prefetch=0,
            grid=(B,),
            in_specs=[x_spec, w_spec, bias_spec],
            out_specs=[qkv_out_spec, qkv_out_spec, qkv_out_spec],
        ),
        compiler_params=pltpu.CompilerParams(dimension_semantics=("parallel",)),
        cost_estimate=proj_cost,
    )(x, w_qkv, b_qkv)

    # split_heads: torch `.view(B, H, S, Dh)` on a contiguous (B, S, D) tensor
    # is a plain row-major reshape (no transpose). On contiguous XLA arrays this
    # is a free metadata reshape — the lane-splitting relayout is NOT done
    # inside the kernel.
    qh = q2d.reshape(B, num_heads, S, Dh)
    kh = k2d.reshape(B, num_heads, S, Dh)
    vh = v2d.reshape(B, num_heads, S, Dh)

    # ---------------- attention call ----------------
    head_spec = pl.BlockSpec((None, num_heads, S, Dh), lambda b: (b, 0, 0, 0))
    attn_cost = pl.CostEstimate(
        flops=4 * B * num_heads * S * S * Dh,
        transcendentals=B * num_heads * S * S,
        bytes_accessed=4 * B * S * D * itemsize,
    )

    out = pl.pallas_call(
        functools.partial(_attn_kernel, num_heads=num_heads, head_dim=Dh),
        out_shape=jax.ShapeDtypeStruct((B, S, D), dtype),
        grid_spec=pltpu.PrefetchScalarGridSpec(
            num_scalar_prefetch=0,
            grid=(B,),
            in_specs=[head_spec, head_spec, head_spec],
            out_specs=pl.BlockSpec((None, S, D), lambda b: (b, 0, 0)),
        ),
        compiler_params=pltpu.CompilerParams(dimension_semantics=("parallel",)),
        cost_estimate=attn_cost,
    )(qh, kh, vh)

    # Output is already (B, S, D) in the module's merged layout — no transpose.
    return out


# ---------------------------------------------------------------------------
# Pure-JAX reference (mirrors the PyTorch forward exactly) for verification.
# ---------------------------------------------------------------------------
def reference(x, params, num_heads):
    B, S, D = x.shape
    Dh = D // num_heads
    q = x @ params["wq"].T + params["bq"]
    k = x @ params["wk"].T + params["bk"]
    v = x @ params["wo"].T + params["bo"]          # module bug: V = WO(x)
    qh = q.reshape(B, num_heads, S, Dh)
    kh = k.reshape(B, num_heads, S, Dh)
    vh = v.reshape(B, num_heads, S, Dh)
    scores = jnp.einsum("bhqd,bhkd->bhqk", qh, kh) / float(Dh)
    attn = jax.nn.softmax(scores, axis=-1)
    out = jnp.einsum("bhqk,bhkd->bhqd", attn, vh)
    return out.transpose(0, 2, 1, 3).reshape(B, S, D)


# ---------------------------------------------------------------------------
# Main
# ---------------------------------------------------------------------------
if __name__ == "__main__":
    B, S, D, H = 2, 8, 32, 4          # batch, seq_len, d_model, num_heads

    key = jax.random.PRNGKey(0)
    keys = jax.random.split(key, 10)
    bound = 1.0 / (D ** 0.5)          # PyTorch nn.Linear default init range

    def u(k, shape):
        return jax.random.uniform(k, shape, jnp.float32, -bound, bound)

    params = {
        "wq": u(keys[0], (D, D)), "bq": u(keys[1], (D,)),
        "wk": u(keys[2], (D, D)), "bk": u(keys[3], (D,)),
        "wv": u(keys[4], (D, D)), "bv": u(keys[5], (D,)),   # unused (module quirk)
        "wo": u(keys[6], (D, D)), "bo": u(keys[7], (D,)),
    }
    x = jax.random.normal(keys[8], (B, S, D), jnp.float32)

    mha = jax.jit(functools.partial(multi_head_attention, num_heads=H))
    out = jax.block_until_ready(mha(x, params))

    ref = reference(x, params, H)
    assert out.shape == (B, S, D)
    # Tolerance relaxed vs exact math because the softmax uses the EUP
    # approximate reciprocal (pl.reciprocal(approx=True)).
    max_err = float(jnp.max(jnp.abs(out - ref)))
    assert jnp.allclose(out, ref, atol=1e-2, rtol=1e-2), (
        f"mismatch vs reference, max|diff|={max_err}")

    print("KERNEL_OK")
</pallas_src>

<mosaic_0001>
module attributes {stable_mosaic.version = 11 : i64} {
  func.func @_qkv_proj_kernel(%arg0: i32, %arg1: memref<1x8x32xf32, #tpu.memory_space<vmem>>, %arg2: memref<32x96xf32, #tpu.memory_space<vmem>>, %arg3: memref<1x96xf32, #tpu.memory_space<vmem>>, %arg4: memref<1x8x32xf32, #tpu.memory_space<vmem>>, %arg5: memref<1x8x32xf32, #tpu.memory_space<vmem>>, %arg6: memref<1x8x32xf32, #tpu.memory_space<vmem>>) attributes {dimension_semantics = [#tpu.dimension_semantics<parallel>], iteration_bounds = array<i64: 2>, scalar_prefetch = 0 : i64, scratch_operands = 0 : i64, tpu.core_type = #tpu.core_type<tc>, window_params = [{transform_indices = @transform_0, window_bounds = array<i64: 1, 8, 32>}, {pipeline_mode = #tpu.pipeline_mode<synchronous>, transform_indices = @transform_1, window_bounds = array<i64: 32, 96>}, {pipeline_mode = #tpu.pipeline_mode<synchronous>, transform_indices = @transform_2, window_bounds = array<i64: 1, 96>}, {transform_indices = @transform_3, window_bounds = array<i64: 1, 8, 32>}, {transform_indices = @transform_4, window_bounds = array<i64: 1, 8, 32>}, {transform_indices = @transform_5, window_bounds = array<i64: 1, 8, 32>}]} {
    %c0 = arith.constant 0 : index
    %c0_0 = arith.constant 0 : index
    %c0_1 = arith.constant 0 : index
    %0 = vector.load %arg1[%c0, %c0_0, %c0_1] : memref<1x8x32xf32, #tpu.memory_space<vmem>>, vector<1x8x32xf32>
    %1 = vector.shape_cast %0 : vector<1x8x32xf32> to vector<8x32xf32>
    %c0_2 = arith.constant 0 : index
    %c0_3 = arith.constant 0 : index
    %2 = vector.load %arg2[%c0_2, %c0_3] : memref<32x96xf32, #tpu.memory_space<vmem>>, vector<32x96xf32>
    %cst = arith.constant dense<0.000000e+00> : vector<8x96xf32>
    %3 = tpu.matmul %1, %2, %cst {dimension_numbers = #tpu.dot_dimension_numbers<[1], [0], [0], [1], [0, 0, 1, 1], [], []>} : vector<8x32xf32>, vector<32x96xf32>, vector<8x96xf32> -> vector<8x96xf32>
    %c0_4 = arith.constant 0 : index
    %c0_5 = arith.constant 0 : index
    %4 = vector.load %arg3[%c0_4, %c0_5] : memref<1x96xf32, #tpu.memory_space<vmem>>, vector<1x96xf32>
    %5 = vector.broadcast %4 : vector<1x96xf32> to vector<8x96xf32>
    %6 = arith.addf %3, %5 : vector<8x96xf32>
    %7 = vector.extract_strided_slice %6 {offsets = [0, 0], sizes = [8, 32], strides = [1, 1]} : vector<8x96xf32> to vector<8x32xf32>
    %c0_6 = arith.constant 0 : index
    %c0_7 = arith.constant 0 : index
    %c0_8 = arith.constant 0 : index
    %8 = vector.load %arg4[%c0_6, %c0_7, %c0_8] : memref<1x8x32xf32, #tpu.memory_space<vmem>>, vector<1x8x32xf32>
    %9 = vector.shape_cast %8 : vector<1x8x32xf32> to vector<8x32xf32>
    %10 = vector.shape_cast %7 : vector<8x32xf32> to vector<1x8x32xf32>
    tpu.vector_store %arg4[%c0_6, %c0_7, %c0_8], %10 {strides = array<i32>} : memref<1x8x32xf32, #tpu.memory_space<vmem>>, vector<1x8x32xf32>,
    %11 = vector.extract_strided_slice %6 {offsets = [0, 32], sizes = [8, 32], strides = [1, 1]} : vector<8x96xf32> to vector<8x32xf32>
    %c0_9 = arith.constant 0 : index
    %c0_10 = arith.constant 0 : index
    %c0_11 = arith.constant 0 : index
    %12 = vector.load %arg5[%c0_9, %c0_10, %c0_11] : memref<1x8x32xf32, #tpu.memory_space<vmem>>, vector<1x8x32xf32>
    %13 = vector.shape_cast %12 : vector<1x8x32xf32> to vector<8x32xf32>
    %14 = vector.shape_cast %11 : vector<8x32xf32> to vector<1x8x32xf32>
    tpu.vector_store %arg5[%c0_9, %c0_10, %c0_11], %14 {strides = array<i32>} : memref<1x8x32xf32, #tpu.memory_space<vmem>>, vector<1x8x32xf32>,
    %15 = vector.extract_strided_slice %6 {offsets = [0, 64], sizes = [8, 32], strides = [1, 1]} : vector<8x96xf32> to vector<8x32xf32>
    %c0_12 = arith.constant 0 : index
    %c0_13 = arith.constant 0 : index
    %c0_14 = arith.constant 0 : index
    %16 = vector.load %arg6[%c0_12, %c0_13, %c0_14] : memref<1x8x32xf32, #tpu.memory_space<vmem>>, vector<1x8x32xf32>
    %17 = vector.shape_cast %16 : vector<1x8x32xf32> to vector<8x32xf32>
    %18 = vector.shape_cast %15 : vector<8x32xf32> to vector<1x8x32xf32>
    tpu.vector_store %arg6[%c0_12, %c0_13, %c0_14], %18 {strides = array<i32>} : memref<1x8x32xf32, #tpu.memory_space<vmem>>, vector<1x8x32xf32>,
    return
  }
  func.func @transform_0(%arg0: i32) -> (i32, i32, i32) {
    %c0_i32 = arith.constant 0 : i32
    %c0_i32_0 = arith.constant 0 : i32
    %c0_i32_1 = arith.constant 0 : i32
    return %arg0, %c0_i32, %c0_i32_0 : i32, i32, i32
  }
  func.func @transform_1(%arg0: i32) -> (i32, i32) {
    %c0_i32 = arith.constant 0 : i32
    %c0_i32_0 = arith.constant 0 : i32
    %c0_i32_1 = arith.constant 0 : i32
    return %c0_i32, %c0_i32_0 : i32, i32
  }
  func.func @transform_2(%arg0: i32) -> (i32, i32) {
    %c0_i32 = arith.constant 0 : i32
    %c0_i32_0 = arith.constant 0 : i32
    %c0_i32_1 = arith.constant 0 : i32
    return %c0_i32, %c0_i32_0 : i32, i32
  }
  func.func @transform_3(%arg0: i32) -> (i32, i32, i32) {
    %c0_i32 = arith.constant 0 : i32
    %c0_i32_0 = arith.constant 0 : i32
    %c0_i32_1 = arith.constant 0 : i32
    return %arg0, %c0_i32, %c0_i32_0 : i32, i32, i32
  }
  func.func @transform_4(%arg0: i32) -> (i32, i32, i32) {
    %c0_i32 = arith.constant 0 : i32
    %c0_i32_0 = arith.constant 0 : i32
    %c0_i32_1 = arith.constant 0 : i32
    return %arg0, %c0_i32, %c0_i32_0 : i32, i32, i32
  }
  func.func @transform_5(%arg0: i32) -> (i32, i32, i32) {
    %c0_i32 = arith.constant 0 : i32
    %c0_i32_0 = arith.constant 0 : i32
    %c0_i32_1 = arith.constant 0 : i32
    return %arg0, %c0_i32, %c0_i32_0 : i32, i32, i32
  }
}

module attributes {stable_mosaic.version = 11 : i64} {
  func.func @_attn_kernel(%arg0: i32, %arg1: memref<1x4x8x8xf32, #tpu.memory_space<vmem>>, %arg2: memref<1x4x8x8xf32, #tpu.memory_space<vmem>>, %arg3: memref<1x4x8x8xf32, #tpu.memory_space<vmem>>, %arg4: memref<1x8x32xf32, #tpu.memory_space<vmem>>) attributes {dimension_semantics = [#tpu.dimension_semantics<parallel>], iteration_bounds = array<i64: 2>, scalar_prefetch = 0 : i64, scratch_operands = 0 : i64, tpu.core_type = #tpu.core_type<tc>, window_params = [{transform_indices = @transform_0, window_bounds = array<i64: 1, 4, 8, 8>}, {transform_indices = @transform_1, window_bounds = array<i64: 1, 4, 8, 8>}, {transform_indices = @transform_2, window_bounds = array<i64: 1, 4, 8, 8>}, {transform_indices = @transform_3, window_bounds = array<i64: 1, 8, 32>}]} {
    %c0 = arith.constant 0 : index
    %c0_0 = arith.constant 0 : index
    %c0_1 = arith.constant 0 : index
    %c0_2 = arith.constant 0 : index
    %0 = vector.load %arg1[%c0, %c0_0, %c0_1, %c0_2] : memref<1x4x8x8xf32, #tpu.memory_space<vmem>>, vector<1x4x8x8xf32>
    %1 = vector.shape_cast %0 : vector<1x4x8x8xf32> to vector<4x8x8xf32>
    %cst = arith.constant 1.250000e-01 : f32
    %2 = vector.broadcast %cst : f32 to vector<4x8x8xf32>
    %3 = arith.mulf %1, %2 : vector<4x8x8xf32>
    %c0_3 = arith.constant 0 : index
    %c0_4 = arith.constant 0 : index
    %c0_5 = arith.constant 0 : index
    %c0_6 = arith.constant 0 : index
    %4 = vector.load %arg2[%c0_3, %c0_4, %c0_5, %c0_6] : memref<1x4x8x8xf32, #tpu.memory_space<vmem>>, vector<1x4x8x8xf32>
    %5 = vector.shape_cast %4 : vector<1x4x8x8xf32> to vector<4x8x8xf32>
    %c0_7 = arith.constant 0 : index
    %c0_8 = arith.constant 0 : index
    %c0_9 = arith.constant 0 : index
    %c0_10 = arith.constant 0 : index
    %6 = vector.load %arg3[%c0_7, %c0_8, %c0_9, %c0_10] : memref<1x4x8x8xf32, #tpu.memory_space<vmem>>, vector<1x4x8x8xf32>
    %7 = vector.shape_cast %6 : vector<1x4x8x8xf32> to vector<4x8x8xf32>
    "tpu.trace_start"() <{level = 10 : i32, message = "hqd,hkd->hqk"}> : () -> ()
    %cst_11 = arith.constant dense<0.000000e+00> : vector<4x8x8xf32>
    %8 = tpu.matmul %3, %5, %cst_11 {dimension_numbers = #tpu.dot_dimension_numbers<[2], [2], [1], [1], [0, 0, 0, 1, 1, 1], [0], [0]>} : vector<4x8x8xf32>, vector<4x8x8xf32>, vector<4x8x8xf32> -> vector<4x8x8xf32>
    "tpu.trace_stop"() : () -> ()
    %cst_12 = arith.constant dense<0xFF800000> : vector<4x8xf32>
    %9 = vector.multi_reduction <maximumf>, %8, %cst_12 [2] : vector<4x8x8xf32> to vector<4x8xf32>
    %10 = vector.shape_cast %9 : vector<4x8xf32> to vector<4x8x1xf32>
    %11 = vector.broadcast %10 : vector<4x8x1xf32> to vector<4x8x8xf32>
    %12 = arith.subf %8, %11 : vector<4x8x8xf32>
    %13 = math.exp %12 : vector<4x8x8xf32>
    %cst_13 = arith.constant dense<0.000000e+00> : vector<4x8xf32>
    %14 = vector.multi_reduction <add>, %13, %cst_13 [2] : vector<4x8x8xf32> to vector<4x8xf32>
    %15 = vector.shape_cast %14 : vector<4x8xf32> to vector<4x8x1xf32>
    %16 = tpu.reciprocal %15 {approx = true} : vector<4x8x1xf32> -> vector<4x8x1xf32>
    %17 = vector.broadcast %16 : vector<4x8x1xf32> to vector<4x8x8xf32>
    %18 = arith.mulf %13, %17 : vector<4x8x8xf32>
    "tpu.trace_start"() <{level = 10 : i32, message = "hqk,hkd->hqd"}> : () -> ()
    %cst_14 = arith.constant dense<0.000000e+00> : vector<4x8x8xf32>
    %19 = tpu.matmul %18, %7, %cst_14 {dimension_numbers = #tpu.dot_dimension_numbers<[2], [1], [1], [2], [0, 0, 0, 1, 1, 2], [0], [0]>} : vector<4x8x8xf32>, vector<4x8x8xf32>, vector<4x8x8xf32> -> vector<4x8x8xf32>
    "tpu.trace_stop"() : () -> ()
    %20 = vector.extract_strided_slice %19 {offsets = [0, 0, 0], sizes = [1, 8, 8], strides = [1, 1, 1]} : vector<4x8x8xf32> to vector<1x8x8xf32>
    %21 = vector.shape_cast %20 : vector<1x8x8xf32> to vector<8x8xf32>
    %22 = vector.extract_strided_slice %19 {offsets = [1, 0, 0], sizes = [1, 8, 8], strides = [1, 1, 1]} : vector<4x8x8xf32> to vector<1x8x8xf32>
    %23 = vector.shape_cast %22 : vector<1x8x8xf32> to vector<8x8xf32>
    %24 = vector.extract_strided_slice %19 {offsets = [2, 0, 0], sizes = [1, 8, 8], strides = [1, 1, 1]} : vector<4x8x8xf32> to vector<1x8x8xf32>
    %25 = vector.shape_cast %24 : vector<1x8x8xf32> to vector<8x8xf32>
    %26 = vector.extract_strided_slice %19 {offsets = [3, 0, 0], sizes = [1, 8, 8], strides = [1, 1, 1]} : vector<4x8x8xf32> to vector<1x8x8xf32>
    %27 = vector.shape_cast %26 : vector<1x8x8xf32> to vector<8x8xf32>
    %28 = tpu.concatenate %21, %23, %25, %27 in 1 : vector<8x8xf32>, vector<8x8xf32>, vector<8x8xf32>, vector<8x8xf32> -> vector<8x32xf32>
    %c0_15 = arith.constant 0 : index
    %c0_16 = arith.constant 0 : index
    %c0_17 = arith.constant 0 : index
    %29 = vector.load %arg4[%c0_15, %c0_16, %c0_17] : memref<1x8x32xf32, #tpu.memory_space<vmem>>, vector<1x8x32xf32>
    %30 = vector.shape_cast %29 : vector<1x8x32xf32> to vector<8x32xf32>
    %31 = vector.shape_cast %28 : vector<8x32xf32> to vector<1x8x32xf32>
    tpu.vector_store %arg4[%c0_15, %c0_16, %c0_17], %31 {strides = array<i32>} : memref<1x8x32xf32, #tpu.memory_space<vmem>>, vector<1x8x32xf32>,
    return
  }
  func.func @transform_0(%arg0: i32) -> (i32, i32, i32, i32) {
    %c0_i32 = arith.constant 0 : i32
    %c0_i32_0 = arith.constant 0 : i32
    %c0_i32_1 = arith.constant 0 : i32
    %c0_i32_2 = arith.constant 0 : i32
    return %arg0, %c0_i32, %c0_i32_0, %c0_i32_1 : i32, i32, i32, i32
  }
  func.func @transform_1(%arg0: i32) -> (i32, i32, i32, i32) {
    %c0_i32 = arith.constant 0 : i32
    %c0_i32_0 = arith.constant 0 : i32
    %c0_i32_1 = arith.constant 0 : i32
    %c0_i32_2 = arith.constant 0 : i32
    return %arg0, %c0_i32, %c0_i32_0, %c0_i32_1 : i32, i32, i32, i32
  }
  func.func @transform_2(%arg0: i32) -> (i32, i32, i32, i32) {
    %c0_i32 = arith.constant 0 : i32
    %c0_i32_0 = arith.constant 0 : i32
    %c0_i32_1 = arith.constant 0 : i32
    %c0_i32_2 = arith.constant 0 : i32
    return %arg0, %c0_i32, %c0_i32_0, %c0_i32_1 : i32, i32, i32, i32
  }
  func.func @transform_3(%arg0: i32) -> (i32, i32, i32) {
    %c0_i32 = arith.constant 0 : i32
    %c0_i32_0 = arith.constant 0 : i32
    %c0_i32_1 = arith.constant 0 : i32
    return %arg0, %c0_i32, %c0_i32_0 : i32, i32, i32
  }
}

</mosaic_0001>

<llo_original>
// kernel: multi_head_attention.2
$region0: #{multi_head_attention.2}
  #allocation0 [shape = 'u32[]', space=smem, size = 0x4, offset = 0x4, fixed_abs, tag = 'smem constant byte address 0x4 - core index']
  #allocation1 [shape = 'u32[144,128]{1,0:T(1,128)}', space=vmem, size = 0x12000, scoped, tag = 'internal scratch']
  %s0 = inlined_call_operand.vmem [shape: f32[2,8,32], index: 0, kind: input, shape index: {}]
  %s1 = inlined_call_operand.vmem [shape: f32[32,96], index: 1, kind: input, shape index: {}]
  %s2 = inlined_call_operand.vmem [shape: f32[1,96], index: 2, kind: input, shape index: {}]
  %s3 = inlined_call_operand.vmem [shape: f32[2,8,32], index: 3, kind: output, shape index: {0}]
  %s4 = inlined_call_operand.vmem [shape: f32[2,8,32], index: 4, kind: output, shape index: {1}]
  %s5 = inlined_call_operand.vmem [shape: f32[2,8,32], index: 5, kind: output, shape index: {2}]
  %6 = xla_tuple %s3, %s4, %s5
  %s7 = sld [smem:[#allocation0]]
  $region61: #{multi_head_attention.2} parent=0
    _
  %s9 = ssub.s32 1, %s7
  %s10 = scalar_select 0, %s9, %s7
  loop: start=0, step=1, limit=4
  $region2: #{multi_head_attention.2} parent=0 // loop_pre_header
    _
  $region3: #{multi_head_attention.2} parent=0 // loop_header
    %s12 = sphi 0, %s16
    %p13 = scmp.ge.s32.totalorder %s12, 4
    %s22 = sphi 0, %s24
    %s25 = sphi 0, %s22
    %s26 = sphi 0, %s25
    %s42 = sphi 0, %s26
    %s46 = sphi 0, %s46
    %s48 = sphi 0, %s46
    %s49 = sphi 0, %s48
    %s63 = sphi 0, %s49
    %s67 = sphi 0, %s67
    %s69 = sphi 0, %s67
    %s70 = sphi 0, %s69
    %s84 = sphi 0, %s70
    %s90 = sphi 0, %s92
    %s93 = sphi 0, %s90
    %s94 = sphi 0, %s93
    %s110 = sphi 0, %s94
    %s116 = sphi 0, %s118
    %s119 = sphi 0, %s116
    %s120 = sphi 0, %s119
    %s136 = sphi 0, %s120
    %s142 = sphi 0, %s144
    %s145 = sphi 0, %s142
    %s146 = sphi 0, %s145
    %s162 = sphi 0, %s146
  $region4: #{multi_head_attention.2} parent=0 // loop_header_branch
    %15 = sbr.rel (%p13) target = $region8
  $region5: #{multi_head_attention.2} parent=0 // loop_body
    %s17 = ssub.s32 %s12, 1
    %s18 = ssub.s32 %s12, 2
    %s19 = sadd.s32 %s12, 1
    %s20 = ssub.s32 %s12, %s19
    %p21 = scmp.eq.s32.totalorder %s20, 0
    %s23 = sadd.s32 %s22, 1
    %s24 = scalar_select %p21, %s22, %s23
    %p27 = pneg %p21
    %p28 = scmp.eq.s32.totalorder %s12, 1
    %p29 = por %p27, %p28
    %p30 = scmp.ne.s32.totalorder %s22, %s25
    %p31 = scmp.eq.s32.totalorder %s12, 0
    %p32 = por %p30, %p31
    %p33 = scmp.ne.s32.totalorder %s22, %s25
    %p34 = scmp.eq.s32.totalorder %s17, 1
    %p35 = por %p33, %p34
    %p36 = scmp.ne.s32.totalorder %s25, %s26
    %p37 = scmp.eq.s32.totalorder %s17, 0
    %p38 = por %p36, %p37
    %p39 = scmp.ne.s32.totalorder %s25, %s26
    %p40 = scmp.eq.s32.totalorder %s18, 1
    %p41 = por %p39, %p40
    %p43 = scmp.ne.s32.totalorder %s26, %s42
    %p44 = scmp.eq.s32.totalorder %s18, 0
    %p45 = por %p43, %p44
    %s47 = sadd.s32 %s46, 1
    %p50 = scmp.eq.s32.totalorder %s12, 1
    %p51 = scmp.ne.s32.totalorder %s46, %s48
    %p52 = scmp.eq.s32.totalorder %s12, 0
    %p53 = por %p51, %p52
    %p54 = scmp.ne.s32.totalorder %s46, %s48
    %p55 = scmp.eq.s32.totalorder %s17, 1
    %p56 = por %p54, %p55
    %p57 = scmp.ne.s32.totalorder %s48, %s49
    %p58 = scmp.eq.s32.totalorder %s17, 0
    %p59 = por %p57, %p58
    %p60 = scmp.ne.s32.totalorder %s48, %s49
    %p61 = scmp.eq.s32.totalorder %s18, 1
    %p62 = por %p60, %p61
    %p64 = scmp.ne.s32.totalorder %s49, %s63
    %p65 = scmp.eq.s32.totalorder %s18, 0
    %p66 = por %p64, %p65
    %s68 = sadd.s32 %s67, 1
    %p71 = scmp.eq.s32.totalorder %s12, 1
    %p72 = scmp.ne.s32.totalorder %s67, %s69
    %p73 = scmp.eq.s32.totalorder %s12, 0
    %p74 = por %p72, %p73
    %p75 = scmp.ne.s32.totalorder %s67, %s69
    %p76 = scmp.eq.s32.totalorder %s17, 1
    %p77 = por %p75, %p76
    %p78 = scmp.ne.s32.totalorder %s69, %s70
    %p79 = scmp.eq.s32.totalorder %s17, 0
    %p80 = por %p78, %p79
    %p81 = scmp.ne.s32.totalorder %s69, %s70
    %p82 = scmp.eq.s32.totalorder %s18, 1
    %p83 = por %p81, %p82
    %p85 = scmp.ne.s32.totalorder %s70, %s84
    %p86 = scmp.eq.s32.totalorder %s18, 0
    %p87 = por %p85, %p86
    %s88 = ssub.s32 %s12, %s19
    %p89 = scmp.eq.s32.totalorder %s88, 0
    %s91 = sadd.s32 %s90, 1
    %s92 = scalar_select %p89, %s90, %s91
    %p95 = pneg %p89
    %p96 = scmp.eq.s32.totalorder %s12, 1
    %p97 = por %p95, %p96
    %p98 = scmp.ne.s32.totalorder %s90, %s93
    %p99 = scmp.eq.s32.totalorder %s12, 0
    %p100 = por %p98, %p99
    %p101 = scmp.ne.s32.totalorder %s90, %s93
    %p102 = scmp.eq.s32.totalorder %s17, 1
    %p103 = por %p101, %p102
    %p104 = scmp.ne.s32.totalorder %s93, %s94
    %p105 = scmp.eq.s32.totalorder %s17, 0
    %p106 = por %p104, %p105
    %p107 = scmp.ne.s32.totalorder %s93, %s94
    %p108 = scmp.eq.s32.totalorder %s18, 1
    %p109 = por %p107, %p108
    %p111 = scmp.ne.s32.totalorder %s94, %s110
    %p112 = scmp.eq.s32.totalorder %s18, 0
    %p113 = por %p111, %p112
    %s114 = ssub.s32 %s12, %s19
    %p115 = scmp.eq.s32.totalorder %s114, 0
    %s117 = sadd.s32 %s116, 1
    %s118 = scalar_select %p115, %s116, %s117
    %p121 = pneg %p115
    %p122 = scmp.eq.s32.totalorder %s12, 1
    %p123 = por %p121, %p122
    %p124 = scmp.ne.s32.totalorder %s116, %s119
    %p125 = scmp.eq.s32.totalorder %s12, 0
    %p126 = por %p124, %p125
    %p127 = scmp.ne.s32.totalorder %s116, %s119
    %p128 = scmp.eq.s32.totalorder %s17, 1
    %p129 = por %p127, %p128
    %p130 = scmp.ne.s32.totalorder %s119, %s120
    %p131 = scmp.eq.s32.totalorder %s17, 0
    %p132 = por %p130, %p131
    %p133 = scmp.ne.s32.totalorder %s119, %s120
    %p134 = scmp.eq.s32.totalorder %s18, 1
    %p135 = por %p133, %p134
    %p137 = scmp.ne.s32.totalorder %s120, %s136
    %p138 = scmp.eq.s32.totalorder %s18, 0
    %p139 = por %p137, %p138
    %s140 = ssub.s32 %s12, %s19
    %p141 = scmp.eq.s32.totalorder %s140, 0
    %s143 = sadd.s32 %s142, 1
    %s144 = scalar_select %p141, %s142, %s143
    %p147 = pneg %p141
    %p148 = scmp.eq.s32.totalorder %s12, 1
    %p149 = por %p147, %p148
    %p150 = scmp.ne.s32.totalorder %s142, %s145
    %p151 = scmp.eq.s32.totalorder %s12, 0
    %p152 = por %p150, %p151
    %p153 = scmp.ne.s32.totalorder %s142, %s145
    %p154 = scmp.eq.s32.totalorder %s17, 1
    %p155 = por %p153, %p154
    %p156 = scmp.ne.s32.totalorder %s145, %s146
    %p157 = scmp.eq.s32.totalorder %s17, 0
    %p158 = por %p156, %p157
    %p159 = scmp.ne.s32.totalorder %s145, %s146
    %p160 = scmp.eq.s32.totalorder %s18, 1
    %p161 = por %p159, %p160
    %p163 = scmp.ne.s32.totalorder %s146, %s162
    %p164 = scmp.eq.s32.totalorder %s18, 0
    %p165 = por %p163, %p164
    %p166 = scmp.le.s32.totalorder 1, %s12
    %p167 = scmp.lt.s32.totalorder %s12, 3
    %p168 = pnand %p166, %p167
    %p169 = pneg %p168
    // Predicated region
    $region9: #{multi_head_attention.2} parent=5 // pred_check
      _
    $region10: #{multi_head_attention.2} parent=5 // pred_check_branch
      %171 = sbr.rel (%p168) target = $region12
    $region11: #{multi_head_attention.2} parent=5 // pred_region
      %s172 = ssub.s32 %s12, 1
      // Predicated region
      $region13: #{multi_head_attention.2} parent=11 // pred_check
        %p173 = pneg %p59
      $region14: #{multi_head_attention.2} parent=11 // pred_check_branch
        %175 = sbr.rel (%p173) target = $region16
      $region15: #{multi_head_attention.2} parent=11 // pred_region
        _
      $region16: #{multi_head_attention.2} parent=11 // pred_fallthru
        _
      // Predicated region
      $region17: #{multi_head_attention.2} parent=11 // pred_check
        %p176 = pneg %p80
      $region18: #{multi_head_attention.2} parent=11 // pred_check_branch
        %178 = sbr.rel (%p176) target = $region20
      $region19: #{multi_head_attention.2} parent=11 // pred_region
        _
      $region20: #{multi_head_attention.2} parent=11 // pred_fallthru
        _
    $region12: #{multi_head_attention.2} parent=5 // pred_fallthru
      _
    %p179 = scmp.lt.s32.totalorder %s12, 2
    // Predicated region
    $region21: #{multi_head_attention.2} parent=5 // pred_check
      %p180 = pneg %p179
    $region22: #{multi_head_attention.2} parent=5 // pred_check_branch
      %182 = sbr.rel (%p180) target = $region24
    $region23: #{multi_head_attention.2} parent=5 // pred_region
      // Predicated region
      $region25: #{multi_head_attention.2} parent=23 // pred_check
        %p183 = pneg %p32
      $region26: #{multi_head_attention.2} parent=23 // pred_check_branch
        %185 = sbr.rel (%p183) target = $region28
      $region27: #{multi_head_attention.2} parent=23 // pred_region
        %p186 = scmp.lt.s32.totalorder %s12, 1
        %s187 = scalar_select %p186, %s12, 1
        %s188 = smul.addr %s187, 8
        %s189 = scalar_lea.vmem %s0, %s188
      $region28: #{multi_head_attention.2} parent=23 // pred_fallthru
        _
    $region24: #{multi_head_attention.2} parent=5 // pred_fallthru
      _
    %p190 = scmp.le.s32.totalorder 1, %s12
    %p191 = scmp.lt.s32.totalorder %s12, 3
    %p192 = pnand %p190, %p191
    %p193 = pneg %p192
    // Predicated region
    $region29: #{multi_head_attention.2} parent=5 // pred_check
      _
    $region30: #{multi_head_attention.2} parent=5 // pred_check_branch
      %195 = sbr.rel (%p192) target = $region32
    $region31: #{multi_head_attention.2} parent=5 // pred_region
      %s196 = ssub.s32 %s12, 1
      %p197 = scmp.lt.s32.totalorder %s17, 1
      %s198 = scalar_select %p197, %s17, 1
      %s199 = smul.addr %s198, 8
      %s200 = scalar_lea.vmem %s0, %s199
      %p201 = pneg %p38
      %p202 = pneg %p35
      %p203 = pneg %p59
      %p204 = pneg %p56
      %p205 = pneg %p80
      %p206 = pneg %p77
      %p207 = pneg %p106
      %p208 = pneg %p103
      %p209 = scmp.lt.s32.totalorder %s17, 1
      %s210 = scalar_select %p209, %s17, 1
      %s211 = smul.addr %s210, 8
      %s212 = scalar_lea.vmem %s3, %s211
      %p213 = pneg %p132
      %p214 = pneg %p129
      %p215 = scmp.lt.s32.totalorder %s17, 1
      %s216 = scalar_select %p215, %s17, 1
      %s217 = smul.addr %s216, 8
      %s218 = scalar_lea.vmem %s4, %s217
      %p219 = pneg %p158
      %p220 = pneg %p155
      %p221 = scmp.lt.s32.totalorder %s17, 1
      %s222 = scalar_select %p221, %s17, 1
      %s223 = smul.addr %s222, 8
      %s224 = scalar_lea.vmem %s5, %s223
      %p225 = scmp.lt.s32.totalorder %s17, 1
      %s226 = scalar_select %p225, %s17, 1
      %s227 = smul.addr %s226, 8
      %s228 = scalar_lea.vmem %s0, %s227
      %p229 = scmp.lt.s32.totalorder %s17, 1
      %s230 = scalar_select %p229, %s17, 1
      %s231 = smul.addr %s230, 8
      %s232 = scalar_lea.vmem %s3, %s231
      %p233 = scmp.lt.s32.totalorder %s17, 1
      %s234 = scalar_select %p233, %s17, 1
      %s235 = smul.addr %s234, 8
      %s236 = scalar_lea.vmem %s4, %s235
      %p237 = scmp.lt.s32.totalorder %s17, 1
      %s238 = scalar_select %p237, %s17, 1
      %s239 = smul.addr %s238, 8
      %s240 = scalar_lea.vmem %s5, %s239
      %v241 = vld [vmem:[%s228] sm:$0xff]
      %v242 = vld [vmem:[%s1] sm:$0xff]
      %v243 = vld [vmem:[%s1 + $0x8] sm:$0xff]
      %v244 = vld [vmem:[%s1 + $0x10] sm:$0xff]
      %v245 = vld [vmem:[%s1 + $0x18] sm:$0xff]
      %v246 = vld [vmem:[%s2] sm:$0x1]
      %v248 = vlaneseq
      %v249 = vshrl.u32 %v248, 7
      %v250 = vsub.s32 0, %v249
      %v251 = vrot.slane %v246, %v250
      %vm253 = vcmask 261120
      %v255 = vsel %vm253, %v241, 0
      %257 = vmatprep.subr.mxu0 0.0
      %258 = vmatpush1.msra.mxu0 %v242
      %259 = vmatprep.subr.mxu0 0.0
      %260 = vmatpush1.msra.mxu0 %v243
      %261 = vmatprep.subr.mxu0 0.0
      %262 = vmatpush1.msra.mxu0 %v244
      %263 = vmatprep.subr.mxu0 0.0
      %264 = vmatpush1.msra.mxu0 %v245
      %265 = vmatprep.subr.mxu0 0.0
      %266 = vmatpush1.msra.mxu0 0.0
      %267 = vmatprep.subr.mxu0 0.0
      %268 = vmatpush1.msra.mxu0 0.0
      %269 = vmatprep.subr.mxu0 0.0
      %270 = vmatpush1.msra.mxu0 0.0
      %271 = vmatprep.subr.mxu0 0.0
      %272 = vmatpush1.msra.mxu0 0.0
      %273 = vmatprep.subr.mxu0 0.0
      %274 = vmatpush1.msra.mxu0 0.0
      %275 = vmatprep.subr.mxu0 0.0
      %276 = vmatpush1.msra.mxu0 0.0
      %277 = vmatprep.subr.mxu0 0.0
      %278 = vmatpush1.msra.mxu0 0.0
      %279 = vmatprep.subr.mxu0 0.0
      %280 = vmatpush1.msra.mxu0 0.0
      %281 = vmatprep.subr.mxu0 0.0
      %282 = vmatpush1.msra.mxu0 0.0
      %283 = vmatprep.subr.mxu0 0.0
      %284 = vmatpush1.msra.mxu0 0.0
      %285 = vmatprep.subr.mxu0 0.0
      %286 = vmatpush1.msra.mxu0 0.0
      %287 = vmatprep.subr.mxu0 0.0
      %288 = vmatpush1.msra.mxu0 0.0
      %289 = vmatprep.subr.mxu0 0.0
      %290 = vmatpush1.msra.mxu0 0.0
      %291 = vmatprep.subr.mxu0 0.0
      %292 = vmatpush1.msra.mxu0 0.0
      %293 = vmatprep.subr.mxu0 0.0
      %294 = vmatpush1.msra.mxu0 0.0
      %295 = vmatprep.subr.mxu0 0.0
      %296 = vmatpush1.msra.mxu0 0.0
      %297 = vmatprep.subr.mxu0 0.0
      %298 = vmatpush1.msra.mxu0 0.0
      %299 = vmatprep.subr.mxu0 0.0
      %300 = vmatpush1.msra.mxu0 0.0
      %301 = vmatprep.subr.mxu0 0.0
      %302 = vmatpush1.msra.mxu0 0.0
      %303 = vmatprep.subr.mxu0 0.0
      %304 = vmatpush1.msra.mxu0 0.0
      %305 = vmatprep.subr.mxu0 0.0
      %306 = vmatpush1.msra.mxu0 0.0
      %307 = vmatprep.subr.mxu0 0.0
      %308 = vmatpush1.msra.mxu0 0.0
      %309 = vmatprep.subr.mxu0 0.0
      %310 = vmatpush1.msra.mxu0 0.0
      %311 = vmatprep.subr.mxu0 0.0
      %312 = vmatpush1.msra.mxu0 0.0
      %313 = vmatprep.subr.mxu0 0.0
      %314 = vmatpush1.msra.mxu0 0.0
      %315 = vmatprep.subr.mxu0 0.0
      %316 = vmatpush1.msra.mxu0 0.0
      %317 = vmatprep.subr.mxu0 0.0
      %318 = vmatpush1.msra.mxu0 0.0
      %319 = vmatprep.subr.mxu0 0.0
      %320 = vmatpush1.msra.mxu0 0.0
      %321 = vmatprep.mubr.f32.mxu0 0.0
      %322 = vmatmul.mubr.f32.gmra.mrb[0].mxu0 %v255
      %v323 = vpop.f32.mrb[0].mxu0
      %v324 = vadd.f32 %v251, %v323
      %v325 = vpop.f32.mrb[0].mxu0
      %326 = vdwg.mxu0
      %327 = vst.msk [vmem:[%s232] sm:$0xff] %vm253, %v324
      %329 = vrot.lane.b32.xlu0 %v324, 96
      %v330 = vpop.permute.xlu0 %329
      %332 = vst.msk [vmem:[%s236] sm:$0xff] %vm253, %v330
      %333 = vrot.lane.b32.xlu0 %v324, 64
      %v334 = vpop.permute.xlu0 %333
      %336 = vst.msk [vmem:[%s240] sm:$0xff] %vm253, %v334
      %p337 = scmp.lt.s32.totalorder %s17, 1
      %s338 = scalar_select %p337, %s17, 1
      %s339 = smul.addr %s338, 8
      %s340 = scalar_lea.vmem %s3, %s339
      %p341 = scmp.lt.s32.totalorder %s17, 1
      %s342 = scalar_select %p341, %s17, 1
      %s343 = smul.addr %s342, 8
      %s344 = scalar_lea.vmem %s4, %s343
      %p345 = scmp.lt.s32.totalorder %s17, 1
      %s346 = scalar_select %p345, %s17, 1
      %s347 = smul.addr %s346, 8
      %s348 = scalar_lea.vmem %s5, %s347
      // Predicated region
      $region33: #{multi_head_attention.2} parent=31 // pred_check
        %p349 = pneg %p103
      $region34: #{multi_head_attention.2} parent=31 // pred_check_branch
        %351 = sbr.rel (%p349) target = $region36
      $region35: #{multi_head_attention.2} parent=31 // pred_region
        _
      $region36: #{multi_head_attention.2} parent=31 // pred_fallthru
        _
      // Predicated region
      $region37: #{multi_head_attention.2} parent=31 // pred_check
        %p352 = pneg %p129
      $region38: #{multi_head_attention.2} parent=31 // pred_check_branch
        %354 = sbr.rel (%p352) target = $region40
      $region39: #{multi_head_attention.2} parent=31 // pred_region
        _
      $region40: #{multi_head_attention.2} parent=31 // pred_fallthru
        _
      // Predicated region
      $region41: #{multi_head_attention.2} parent=31 // pred_check
        %p355 = pneg %p155
      $region42: #{multi_head_attention.2} parent=31 // pred_check_branch
        %357 = sbr.rel (%p355) target = $region44
      $region43: #{multi_head_attention.2} parent=31 // pred_region
        _
      $region44: #{multi_head_attention.2} parent=31 // pred_fallthru
        _
    $region32: #{multi_head_attention.2} parent=5 // pred_fallthru
      _
    %p358 = scmp.le.s32.totalorder 2, %s12
    // Predicated region
    $region45: #{multi_head_attention.2} parent=5 // pred_check
      %p359 = pneg %p358
    $region46: #{multi_head_attention.2} parent=5 // pred_check_branch
      %361 = sbr.rel (%p359) target = $region48
    $region47: #{multi_head_attention.2} parent=5 // pred_region
      %s362 = ssub.s32 %s12, 2
      // Predicated region
      $region49: #{multi_head_attention.2} parent=47 // pred_check
        %p363 = pneg %p109
      $region50: #{multi_head_attention.2} parent=47 // pred_check_branch
        %365 = sbr.rel (%p363) target = $region52
      $region51: #{multi_head_attention.2} parent=47 // pred_region
        %p366 = scmp.lt.s32.totalorder %s18, 1
        %s367 = scalar_select %p366, %s18, 1
        %s368 = smul.addr %s367, 8
        %s369 = scalar_lea.vmem %s3, %s368
      $region52: #{multi_head_attention.2} parent=47 // pred_fallthru
        _
      // Predicated region
      $region53: #{multi_head_attention.2} parent=47 // pred_check
        %p370 = pneg %p135
      $region54: #{multi_head_attention.2} parent=47 // pred_check_branch
        %372 = sbr.rel (%p370) target = $region56
      $region55: #{multi_head_attention.2} parent=47 // pred_region
        %p373 = scmp.lt.s32.totalorder %s18, 1
        %s374 = scalar_select %p373, %s18, 1
        %s375 = smul.addr %s374, 8
        %s376 = scalar_lea.vmem %s4, %s375
      $region56: #{multi_head_attention.2} parent=47 // pred_fallthru
        _
      // Predicated region
      $region57: #{multi_head_attention.2} parent=47 // pred_check
        %p377 = pneg %p161
      $region58: #{multi_head_attention.2} parent=47 // pred_check_branch
        %379 = sbr.rel (%p377) target = $region60
      $region59: #{multi_head_attention.2} parent=47 // pred_region
        %p380 = scmp.lt.s32.totalorder %s18, 1
        %s381 = scalar_select %p380, %s18, 1
        %s382 = smul.addr %s381, 8
        %s383 = scalar_lea.vmem %s5, %s382
      $region60: #{multi_head_attention.2} parent=47 // pred_fallthru
        _
    $region48: #{multi_head_attention.2} parent=5 // pred_fallthru
      _
  $region6: #{multi_head_attention.2} parent=0 // loop_footer
    %s16 = sadd.s32 1, %s12
  $region7: #{multi_head_attention.2} parent=0 // loop_footer_branch
    %11 = sbr.rel target = $region3
  $region8: #{multi_head_attention.2} parent=0 // loop_exit
    _

// kernel: multi_head_attention.3
$region0: #{multi_head_attention.3}
  #allocation0 [shape = 'u32[]', space=smem, size = 0x4, offset = 0x4, fixed_abs, tag = 'smem constant byte address 0x4 - core index']
  #allocation1 [shape = 'u32[144,128]{1,0:T(1,128)}', space=vmem, size = 0x12000, scoped, tag = 'internal scratch']
  %s0 = inlined_call_operand.vmem [shape: f32[2,4,8,8], index: 0, kind: input, shape index: {}]
  %s1 = inlined_call_operand.vmem [shape: f32[2,4,8,8], index: 1, kind: input, shape index: {}]
  %s2 = inlined_call_operand.vmem [shape: f32[2,4,8,8], index: 2, kind: input, shape index: {}]
  %s3 = inlined_call_operand.hbm [shape: f32[2,8,32], index: 3, kind: output, shape index: {}]
  %s4 = sld [smem:[#allocation0]]
  $region45: #{multi_head_attention.3} parent=0
    _
  %s6 = ssub.s32 1, %s4
  %s7 = scalar_select 0, %s6, %s4
  $region1: #{multi_head_attention.3} parent=0
    #allocation2 [shape = 'u8[8192]{0}', space=vmem, size = 0x2000, scoped, tag = 'output window, operand 0']
    #allocation3 [shape = 's32[2]{0}', space=sflag, size = 0x8, scoped, tag = 'scoped memory for multi_head_attention.3']
    %8 = vsyncpa [#allocation3], 0
    %s9 = scalar_lea.sflag [#allocation3], 1
    %10 = vsyncpa %s9, 0
    loop: start=0, step=1, limit=4
    $region2: #{multi_head_attention.3} parent=1 // loop_pre_header
      _
    $region3: #{multi_head_attention.3} parent=1 // loop_header
      %s12 = sphi 0, %s16
      %p13 = scmp.ge.s32.totalorder %s12, 4
      %s22 = sphi 0, %s24
      %s25 = sphi 0, %s22
      %s26 = sphi 0, %s25
      %s42 = sphi 0, %s26
      %s48 = sphi 0, %s50
      %s51 = sphi 0, %s48
      %s52 = sphi 0, %s51
      %s68 = sphi 0, %s52
      %s74 = sphi 0, %s76
      %s77 = sphi 0, %s74
      %s78 = sphi 0, %s77
      %s94 = sphi 0, %s78
      %s100 = sphi 0, %s102
      %s103 = sphi 0, %s100
      %s104 = sphi 0, %s103
      %s120 = sphi 0, %s104
    $region4: #{multi_head_attention.3} parent=1 // loop_header_branch
      %15 = sbr.rel (%p13) target = $region8
    $region5: #{multi_head_attention.3} parent=1 // loop_body
      %s17 = ssub.s32 %s12, 1
      %s18 = ssub.s32 %s12, 2
      %s19 = sadd.s32 %s12, 1
      %s20 = ssub.s32 %s12, %s19
      %p21 = scmp.eq.s32.totalorder %s20, 0
      %s23 = sadd.s32 %s22, 1
      %s24 = scalar_select %p21, %s22, %s23
      %p27 = pneg %p21
      %p28 = scmp.eq.s32.totalorder %s12, 1
      %p29 = por %p27, %p28
      %p30 = scmp.ne.s32.totalorder %s22, %s25
      %p31 = scmp.eq.s32.totalorder %s12, 0
      %p32 = por %p30, %p31
      %p33 = scmp.ne.s32.totalorder %s22, %s25
      %p34 = scmp.eq.s32.totalorder %s17, 1
      %p35 = por %p33, %p34
      %p36 = scmp.ne.s32.totalorder %s25, %s26
      %p37 = scmp.eq.s32.totalorder %s17, 0
      %p38 = por %p36, %p37
      %p39 = scmp.ne.s32.totalorder %s25, %s26
      %p40 = scmp.eq.s32.totalorder %s18, 1
      %p41 = por %p39, %p40
      %p43 = scmp.ne.s32.totalorder %s26, %s42
      %p44 = scmp.eq.s32.totalorder %s18, 0
      %p45 = por %p43, %p44
      %s46 = ssub.s32 %s12, %s19
      %p47 = scmp.eq.s32.totalorder %s46, 0
      %s49 = sadd.s32 %s48, 1
      %s50 = scalar_select %p47, %s48, %s49
      %p53 = pneg %p47
      %p54 = scmp.eq.s32.totalorder %s12, 1
      %p55 = por %p53, %p54
      %p56 = scmp.ne.s32.totalorder %s48, %s51
      %p57 = scmp.eq.s32.totalorder %s12, 0
      %p58 = por %p56, %p57
      %p59 = scmp.ne.s32.totalorder %s48, %s51
      %p60 = scmp.eq.s32.totalorder %s17, 1
      %p61 = por %p59, %p60
      %p62 = scmp.ne.s32.totalorder %s51, %s52
      %p63 = scmp.eq.s32.totalorder %s17, 0
      %p64 = por %p62, %p63
      %p65 = scmp.ne.s32.totalorder %s51, %s52
      %p66 = scmp.eq.s32.totalorder %s18, 1
      %p67 = por %p65, %p66
      %p69 = scmp.ne.s32.totalorder %s52, %s68
      %p70 = scmp.eq.s32.totalorder %s18, 0
      %p71 = por %p69, %p70
      %s72 = ssub.s32 %s12, %s19
      %p73 = scmp.eq.s32.totalorder %s72, 0
      %s75 = sadd.s32 %s74, 1
      %s76 = scalar_select %p73, %s74, %s75
      %p79 = pneg %p73
      %p80 = scmp.eq.s32.totalorder %s12, 1
      %p81 = por %p79, %p80
      %p82 = scmp.ne.s32.totalorder %s74, %s77
      %p83 = scmp.eq.s32.totalorder %s12, 0
      %p84 = por %p82, %p83
      %p85 = scmp.ne.s32.totalorder %s74, %s77
      %p86 = scmp.eq.s32.totalorder %s17, 1
      %p87 = por %p85, %p86
      %p88 = scmp.ne.s32.totalorder %s77, %s78
      %p89 = scmp.eq.s32.totalorder %s17, 0
      %p90 = por %p88, %p89
      %p91 = scmp.ne.s32.totalorder %s77, %s78
      %p92 = scmp.eq.s32.totalorder %s18, 1
      %p93 = por %p91, %p92
      %p95 = scmp.ne.s32.totalorder %s78, %s94
      %p96 = scmp.eq.s32.totalorder %s18, 0
      %p97 = por %p95, %p96
      %s98 = ssub.s32 %s12, %s19
      %p99 = scmp.eq.s32.totalorder %s98, 0
      %s101 = sadd.s32 %s100, 1
      %s102 = scalar_select %p99, %s100, %s101
      %p105 = pneg %p99
      %p106 = scmp.eq.s32.totalorder %s12, 1
      %p107 = por %p105, %p106
      %p108 = scmp.ne.s32.totalorder %s100, %s103
      %p109 = scmp.eq.s32.totalorder %s12, 0
      %p110 = por %p108, %p109
      %p111 = scmp.ne.s32.totalorder %s100, %s103
      %p112 = scmp.eq.s32.totalorder %s17, 1
      %p113 = por %p111, %p112
      %p114 = scmp.ne.s32.totalorder %s103, %s104
      %p115 = scmp.eq.s32.totalorder %s17, 0
      %p116 = por %p114, %p115
      %p117 = scmp.ne.s32.totalorder %s103, %s104
      %p118 = scmp.eq.s32.totalorder %s18, 1
      %p119 = por %p117, %p118
      %p121 = scmp.ne.s32.totalorder %s104, %s120
      %p122 = scmp.eq.s32.totalorder %s18, 0
      %p123 = por %p121, %p122
      %p124 = scmp.le.s32.totalorder 1, %s12
      %p125 = scmp.lt.s32.totalorder %s12, 3
      %p126 = pnand %p124, %p125
      %p127 = pneg %p126
      // Predicated region
      $region9: #{multi_head_attention.3} parent=5 // pred_check
        _
      $region10: #{multi_head_attention.3} parent=5 // pred_check_branch
        %129 = sbr.rel (%p126) target = $region12
      $region11: #{multi_head_attention.3} parent=5 // pred_region
        %s130 = ssub.s32 %s12, 1
      $region12: #{multi_head_attention.3} parent=5 // pred_fallthru
        _
      %p131 = scmp.lt.s32.totalorder %s12, 2
      // Predicated region
      $region13: #{multi_head_attention.3} parent=5 // pred_check
        %p132 = pneg %p131
      $region14: #{multi_head_attention.3} parent=5 // pred_check_branch
        %134 = sbr.rel (%p132) target = $region16
      $region15: #{multi_head_attention.3} parent=5 // pred_region
        // Predicated region
        $region17: #{multi_head_attention.3} parent=15 // pred_check
          %p135 = pneg %p32
        $region18: #{multi_head_attention.3} parent=15 // pred_check_branch
          %137 = sbr.rel (%p135) target = $region20
        $region19: #{multi_head_attention.3} parent=15 // pred_region
          %p138 = scmp.lt.s32.totalorder %s12, 1
          %s139 = scalar_select %p138, %s12, 1
          %s140 = smul.addr %s139, 4
          %s141 = smul.addr %s140, 8
          %s142 = scalar_lea.vmem %s0, %s141
        $region20: #{multi_head_attention.3} parent=15 // pred_fallthru
          _
        // Predicated region
        $region21: #{multi_head_attention.3} parent=15 // pred_check
          %p143 = pneg %p58
        $region22: #{multi_head_attention.3} parent=15 // pred_check_branch
          %145 = sbr.rel (%p143) target = $region24
        $region23: #{multi_head_attention.3} parent=15 // pred_region
          %p146 = scmp.lt.s32.totalorder %s12, 1
          %s147 = scalar_select %p146, %s12, 1
          %s148 = smul.addr %s147, 4
          %s149 = smul.addr %s148, 8
          %s150 = scalar_lea.vmem %s1, %s149
        $region24: #{multi_head_attention.3} parent=15 // pred_fallthru
          _
        // Predicated region
        $region25: #{multi_head_attention.3} parent=15 // pred_check
          %p151 = pneg %p84
        $region26: #{multi_head_attention.3} parent=15 // pred_check_branch
          %153 = sbr.rel (%p151) target = $region28
        $region27: #{multi_head_attention.3} parent=15 // pred_region
          %p154 = scmp.lt.s32.totalorder %s12, 1
          %s155 = scalar_select %p154, %s12, 1
          %s156 = smul.addr %s155, 4
          %s157 = smul.addr %s156, 8
          %s158 = scalar_lea.vmem %s2, %s157
        $region28: #{multi_head_attention.3} parent=15 // pred_fallthru
          _
      $region16: #{multi_head_attention.3} parent=5 // pred_fallthru
        _
      %p159 = scmp.le.s32.totalorder 1, %s12
      %p160 = scmp.lt.s32.totalorder %s12, 3
      %p161 = pnand %p159, %p160
      %p162 = pneg %p161
      // Predicated region
      $region29: #{multi_head_attention.3} parent=5 // pred_check
        _
      $region30: #{multi_head_attention.3} parent=5 // pred_check_branch
        %164 = sbr.rel (%p161) target = $region32
      $region31: #{multi_head_attention.3} parent=5 // pred_region
        %s165 = ssub.s32 %s12, 1
        %p166 = scmp.lt.s32.totalorder %s17, 1
        %s167 = scalar_select %p166, %s17, 1
        %s168 = smul.addr %s167, 4
        %s169 = smul.addr %s168, 8
        %s170 = scalar_lea.vmem %s0, %s169
        %p171 = pneg %p38
        %p172 = pneg %p35
        %p173 = scmp.lt.s32.totalorder %s17, 1
        %s174 = scalar_select %p173, %s17, 1
        %s175 = smul.addr %s174, 4
        %s176 = smul.addr %s175, 8
        %s177 = scalar_lea.vmem %s1, %s176
        %p178 = pneg %p64
        %p179 = pneg %p61
        %p180 = scmp.lt.s32.totalorder %s17, 1
        %s181 = scalar_select %p180, %s17, 1
        %s182 = smul.addr %s181, 4
        %s183 = smul.addr %s182, 8
        %s184 = scalar_lea.vmem %s2, %s183
        %p185 = pneg %p90
        %p186 = pneg %p87
        %p187 = pneg %p116
        %p188 = pneg %p113
        %s189 = sand.u32 %s103, 1
        %s190 = scalar_lea.sflag [#allocation3], %s189
        %s191 = sand.u32 %s103, 1
        %s192 = smul.addr %s191, 8
        %s193 = scalar_lea.vmem [#allocation2], %s192
        %p194 = scmp.lt.s32.totalorder %s17, 1
        %s195 = scalar_select %p194, %s17, 1
        %s196 = smul.addr %s195, 4
        %s197 = smul.addr %s196, 8
        %s198 = scalar_lea.vmem %s0, %s197
        %p199 = scmp.lt.s32.totalorder %s17, 1
        %s200 = scalar_select %p199, %s17, 1
        %s201 = smul.addr %s200, 4
        %s202 = smul.addr %s201, 8
        %s203 = scalar_lea.vmem %s1, %s202
        %p204 = scmp.lt.s32.totalorder %s17, 1
        %s205 = scalar_select %p204, %s17, 1
        %s206 = smul.addr %s205, 4
        %s207 = smul.addr %s206, 8
        %s208 = scalar_lea.vmem %s2, %s207
        %v209 = vld [vmem:[%s198] sm:$0xff]
        %v210 = vld [vmem:[%s198 + $0x8] sm:$0xff]
        %v211 = vld [vmem:[%s198 + $0x10] sm:$0xff]
        %v212 = vld [vmem:[%s198 + $0x18] sm:$0xff]
        %v213 = vmul.f32 %v209, 0.125
        %v214 = vmul.f32 %v210, 0.125
        %v215 = vmul.f32 %v211, 0.125
        %v216 = vmul.f32 %v212, 0.125
        %v217 = vld [vmem:[%s203] sm:$0xff]
        %v218 = vld [vmem:[%s203 + $0x8] sm:$0xff]
        %v219 = vld [vmem:[%s203 + $0x10] sm:$0xff]
        %v220 = vld [vmem:[%s203 + $0x18] sm:$0xff]
        %v221 = vld [vmem:[%s208] sm:$0xff]
        %v222 = vld [vmem:[%s208 + $0x8] sm:$0xff]
        %v223 = vld [vmem:[%s208 + $0x10] sm:$0xff]
        %v224 = vld [vmem:[%s208 + $0x18] sm:$0xff]
        %vm225 = vcmask 64512
        %v227 = vsel %vm225, %v213, 0
        %v230 = vsel %vm225, %v217, 0
        %232 = vmatprep.subr.mxu0 0.0
        %233 = vmatpush1.xpose.msra.mxu0 %v230
        %234 = vmatprep.subr.mxu0 0.0
        %235 = vmatpush1.xpose.msra.mxu0 0.0
        %236 = vmatprep.subr.mxu0 0.0
        %237 = vmatpush1.xpose.msra.mxu0 0.0
        %238 = vmatprep.subr.mxu0 0.0
        %239 = vmatpush1.xpose.msra.mxu0 0.0
        %240 = vmatprep.subr.mxu0 0.0
        %241 = vmatpush1.xpose.msra.mxu0 0.0
        %242 = vmatprep.subr.mxu0 0.0
        %243 = vmatpush1.xpose.msra.mxu0 0.0
        %244 = vmatprep.subr.mxu0 0.0
        %245 = vmatpush1.xpose.msra.mxu0 0.0
        %246 = vmatprep.subr.mxu0 0.0
        %247 = vmatpush1.xpose.msra.mxu0 0.0
        %248 = vmatprep.subr.mxu0 0.0
        %249 = vmatpush1.xpose.msra.mxu0 0.0
        %250 = vmatprep.subr.mxu0 0.0
        %251 = vmatpush1.xpose.msra.mxu0 0.0
        %252 = vmatprep.subr.mxu0 0.0
        %253 = vmatpush1.xpose.msra.mxu0 0.0
        %254 = vmatprep.subr.mxu0 0.0
        %255 = vmatpush1.xpose.msra.mxu0 0.0
        %256 = vmatprep.subr.mxu0 0.0
        %257 = vmatpush1.xpose.msra.mxu0 0.0
        %258 = vmatprep.subr.mxu0 0.0
        %259 = vmatpush1.xpose.msra.mxu0 0.0
        %260 = vmatprep.subr.mxu0 0.0
        %261 = vmatpush1.xpose.msra.mxu0 0.0
        %262 = vmatprep.subr.mxu0 0.0
        %263 = vmatpush1.xpose.msra.mxu0 0.0
        %264 = vmatprep.subr.mxu0 0.0
        %265 = vmatpush1.xpose.msra.mxu0 0.0
        %266 = vmatprep.subr.mxu0 0.0
        %267 = vmatpush1.xpose.msra.mxu0 0.0
        %268 = vmatprep.subr.mxu0 0.0
        %269 = vmatpush1.xpose.msra.mxu0 0.0
        %270 = vmatprep.subr.mxu0 0.0
        %271 = vmatpush1.xpose.msra.mxu0 0.0
        %272 = vmatprep.subr.mxu0 0.0
        %273 = vmatpush1.xpose.msra.mxu0 0.0
        %274 = vmatprep.subr.mxu0 0.0
        %275 = vmatpush1.xpose.msra.mxu0 0.0
        %276 = vmatprep.subr.mxu0 0.0
        %277 = vmatpush1.xpose.msra.mxu0 0.0
        %278 = vmatprep.subr.mxu0 0.0
        %279 = vmatpush1.xpose.msra.mxu0 0.0
        %280 = vmatprep.subr.mxu0 0.0
        %281 = vmatpush1.xpose.msra.mxu0 0.0
        %282 = vmatprep.subr.mxu0 0.0
        %283 = vmatpush1.xpose.msra.mxu0 0.0
        %284 = vmatprep.subr.mxu0 0.0
        %285 = vmatpush1.xpose.msra.mxu0 0.0
        %286 = vmatprep.subr.mxu0 0.0
        %287 = vmatpush1.xpose.msra.mxu0 0.0
        %288 = vmatprep.subr.mxu0 0.0
        %289 = vmatpush1.xpose.msra.mxu0 0.0
        %290 = vmatprep.subr.mxu0 0.0
        %291 = vmatpush1.xpose.msra.mxu0 0.0
        %292 = vmatprep.subr.mxu0 0.0
        %293 = vmatpush1.xpose.msra.mxu0 0.0
        %294 = vmatprep.subr.mxu0 0.0
        %295 = vmatpush1.xpose.msra.mxu0 0.0
        %296 = vmatprep.mubr.f32.mxu0 0.0
        %297 = vmatmul.mubr.f32.gmra.mrb[0].mxu0 %v227
        %v298 = vpop.f32.mrb[0].mxu0
        %v299 = vadd.f32 0.0, %v298
        %v300 = vpop.f32.mrb[0].mxu0
        %301 = vdwg.mxu0
        %v303 = vsel %vm225, %v214, 0
        %v306 = vsel %vm225, %v218, 0
        %308 = vmatprep.subr.mxu0 0.0
        %309 = vmatpush1.xpose.msra.mxu0 %v306
        %310 = vmatprep.subr.mxu0 0.0
        %311 = vmatpush1.xpose.msra.mxu0 0.0
        %312 = vmatprep.subr.mxu0 0.0
        %313 = vmatpush1.xpose.msra.mxu0 0.0
        %314 = vmatprep.subr.mxu0 0.0
        %315 = vmatpush1.xpose.msra.mxu0 0.0
        %316 = vmatprep.subr.mxu0 0.0
        %317 = vmatpush1.xpose.msra.mxu0 0.0
        %318 = vmatprep.subr.mxu0 0.0
        %319 = vmatpush1.xpose.msra.mxu0 0.0
        %320 = vmatprep.subr.mxu0 0.0
        %321 = vmatpush1.xpose.msra.mxu0 0.0
        %322 = vmatprep.subr.mxu0 0.0
        %323 = vmatpush1.xpose.msra.mxu0 0.0
        %324 = vmatprep.subr.mxu0 0.0
        %325 = vmatpush1.xpose.msra.mxu0 0.0
        %326 = vmatprep.subr.mxu0 0.0
        %327 = vmatpush1.xpose.msra.mxu0 0.0
        %328 = vmatprep.subr.mxu0 0.0
        %329 = vmatpush1.xpose.msra.mxu0 0.0
        %330 = vmatprep.subr.mxu0 0.0
        %331 = vmatpush1.xpose.msra.mxu0 0.0
        %332 = vmatprep.subr.mxu0 0.0
        %333 = vmatpush1.xpose.msra.mxu0 0.0
        %334 = vmatprep.subr.mxu0 0.0
        %335 = vmatpush1.xpose.msra.mxu0 0.0
        %336 = vmatprep.subr.mxu0 0.0
        %337 = vmatpush1.xpose.msra.mxu0 0.0
        %338 = vmatprep.subr.mxu0 0.0
        %339 = vmatpush1.xpose.msra.mxu0 0.0
        %340 = vmatprep.subr.mxu0 0.0
        %341 = vmatpush1.xpose.msra.mxu0 0.0
        %342 = vmatprep.subr.mxu0 0.0
        %343 = vmatpush1.xpose.msra.mxu0 0.0
        %344 = vmatprep.subr.mxu0 0.0
        %345 = vmatpush1.xpose.msra.mxu0 0.0
        %346 = vmatprep.subr.mxu0 0.0
        %347 = vmatpush1.xpose.msra.mxu0 0.0
        %348 = vmatprep.subr.mxu0 0.0
        %349 = vmatpush1.xpose.msra.mxu0 0.0
        %350 = vmatprep.subr.mxu0 0.0
        %351 = vmatpush1.xpose.msra.mxu0 0.0
        %352 = vmatprep.subr.mxu0 0.0
        %353 = vmatpush1.xpose.msra.mxu0 0.0
        %354 = vmatprep.subr.mxu0 0.0
        %355 = vmatpush1.xpose.msra.mxu0 0.0
        %356 = vmatprep.subr.mxu0 0.0
        %357 = vmatpush1.xpose.msra.mxu0 0.0
        %358 = vmatprep.subr.mxu0 0.0
        %359 = vmatpush1.xpose.msra.mxu0 0.0
        %360 = vmatprep.subr.mxu0 0.0
        %361 = vmatpush1.xpose.msra.mxu0 0.0
        %362 = vmatprep.subr.mxu0 0.0
        %363 = vmatpush1.xpose.msra.mxu0 0.0
        %364 = vmatprep.subr.mxu0 0.0
        %365 = vmatpush1.xpose.msra.mxu0 0.0
        %366 = vmatprep.subr.mxu0 0.0
        %367 = vmatpush1.xpose.msra.mxu0 0.0
        %368 = vmatprep.subr.mxu0 0.0
        %369 = vmatpush1.xpose.msra.mxu0 0.0
        %370 = vmatprep.subr.mxu0 0.0
        %371 = vmatpush1.xpose.msra.mxu0 0.0
        %372 = vmatprep.mubr.f32.mxu0 0.0
        %373 = vmatmul.mubr.f32.gmra.mrb[0].mxu0 %v303
        %v374 = vpop.f32.mrb[0].mxu0
        %v375 = vadd.f32 0.0, %v374
        %v376 = vpop.f32.mrb[0].mxu0
        %377 = vdwg.mxu0
        %v379 = vsel %vm225, %v215, 0
        %v382 = vsel %vm225, %v219, 0
        %384 = vmatprep.subr.mxu0 0.0
        %385 = vmatpush1.xpose.msra.mxu0 %v382
        %386 = vmatprep.subr.mxu0 0.0
        %387 = vmatpush1.xpose.msra.mxu0 0.0
        %388 = vmatprep.subr.mxu0 0.0
        %389 = vmatpush1.xpose.msra.mxu0 0.0
        %390 = vmatprep.subr.mxu0 0.0
        %391 = vmatpush1.xpose.msra.mxu0 0.0
        %392 = vmatprep.subr.mxu0 0.0
        %393 = vmatpush1.xpose.msra.mxu0 0.0
        %394 = vmatprep.subr.mxu0 0.0
        %395 = vmatpush1.xpose.msra.mxu0 0.0
        %396 = vmatprep.subr.mxu0 0.0
        %397 = vmatpush1.xpose.msra.mxu0 0.0
        %398 = vmatprep.subr.mxu0 0.0
        %399 = vmatpush1.xpose.msra.mxu0 0.0
        %400 = vmatprep.subr.mxu0 0.0
        %401 = vmatpush1.xpose.msra.mxu0 0.0
        %402 = vmatprep.subr.mxu0 0.0
        %403 = vmatpush1.xpose.msra.mxu0 0.0
        %404 = vmatprep.subr.mxu0 0.0
        %405 = vmatpush1.xpose.msra.mxu0 0.0
        %406 = vmatprep.subr.mxu0 0.0
        %407 = vmatpush1.xpose.msra.mxu0 0.0
        %408 = vmatprep.subr.mxu0 0.0
        %409 = vmatpush1.xpose.msra.mxu0 0.0
        %410 = vmatprep.subr.mxu0 0.0
        %411 = vmatpush1.xpose.msra.mxu0 0.0
        %412 = vmatprep.subr.mxu0 0.0
        %413 = vmatpush1.xpose.msra.mxu0 0.0
        %414 = vmatprep.subr.mxu0 0.0
        %415 = vmatpush1.xpose.msra.mxu0 0.0
        %416 = vmatprep.subr.mxu0 0.0
        %417 = vmatpush1.xpose.msra.mxu0 0.0
        %418 = vmatprep.subr.mxu0 0.0
        %419 = vmatpush1.xpose.msra.mxu0 0.0
        %420 = vmatprep.subr.mxu0 0.0
        %421 = vmatpush1.xpose.msra.mxu0 0.0
        %422 = vmatprep.subr.mxu0 0.0
        %423 = vmatpush1.xpose.msra.mxu0 0.0
        %424 = vmatprep.subr.mxu0 0.0
        %425 = vmatpush1.xpose.msra.mxu0 0.0
        %426 = vmatprep.subr.mxu0 0.0
        %427 = vmatpush1.xpose.msra.mxu0 0.0
        %428 = vmatprep.subr.mxu0 0.0
        %429 = vmatpush1.xpose.msra.mxu0 0.0
        %430 = vmatprep.subr.mxu0 0.0
        %431 = vmatpush1.xpose.msra.mxu0 0.0
        %432 = vmatprep.subr.mxu0 0.0
        %433 = vmatpush1.xpose.msra.mxu0 0.0
        %434 = vmatprep.subr.mxu0 0.0
        %435 = vmatpush1.xpose.msra.mxu0 0.0
        %436 = vmatprep.subr.mxu0 0.0
        %437 = vmatpush1.xpose.msra.mxu0 0.0
        %438 = vmatprep.subr.mxu0 0.0
        %439 = vmatpush1.xpose.msra.mxu0 0.0
        %440 = vmatprep.subr.mxu0 0.0
        %441 = vmatpush1.xpose.msra.mxu0 0.0
        %442 = vmatprep.subr.mxu0 0.0
        %443 = vmatpush1.xpose.msra.mxu0 0.0
        %444 = vmatprep.subr.mxu0 0.0
        %445 = vmatpush1.xpose.msra.mxu0 0.0
        %446 = vmatprep.subr.mxu0 0.0
        %447 = vmatpush1.xpose.msra.mxu0 0.0
        %448 = vmatprep.mubr.f32.mxu0 0.0
        %449 = vmatmul.mubr.f32.gmra.mrb[0].mxu0 %v379
        %v450 = vpop.f32.mrb[0].mxu0
        %v451 = vadd.f32 0.0, %v450
        %v452 = vpop.f32.mrb[0].mxu0
        %453 = vdwg.mxu0
        %v455 = vsel %vm225, %v216, 0
        %v458 = vsel %vm225, %v220, 0
        %460 = vmatprep.subr.mxu0 0.0
        %461 = vmatpush1.xpose.msra.mxu0 %v458
        %462 = vmatprep.subr.mxu0 0.0
        %463 = vmatpush1.xpose.msra.mxu0 0.0
        %464 = vmatprep.subr.mxu0 0.0
        %465 = vmatpush1.xpose.msra.mxu0 0.0
        %466 = vmatprep.subr.mxu0 0.0
        %467 = vmatpush1.xpose.msra.mxu0 0.0
        %468 = vmatprep.subr.mxu0 0.0
        %469 = vmatpush1.xpose.msra.mxu0 0.0
        %470 = vmatprep.subr.mxu0 0.0
        %471 = vmatpush1.xpose.msra.mxu0 0.0
        %472 = vmatprep.subr.mxu0 0.0
        %473 = vmatpush1.xpose.msra.mxu0 0.0
        %474 = vmatprep.subr.mxu0 0.0
        %475 = vmatpush1.xpose.msra.mxu0 0.0
        %476 = vmatprep.subr.mxu0 0.0
        %477 = vmatpush1.xpose.msra.mxu0 0.0
        %478 = vmatprep.subr.mxu0 0.0
        %479 = vmatpush1.xpose.msra.mxu0 0.0
        %480 = vmatprep.subr.mxu0 0.0
        %481 = vmatpush1.xpose.msra.mxu0 0.0
        %482 = vmatprep.subr.mxu0 0.0
        %483 = vmatpush1.xpose.msra.mxu0 0.0
        %484 = vmatprep.subr.mxu0 0.0
        %485 = vmatpush1.xpose.msra.mxu0 0.0
        %486 = vmatprep.subr.mxu0 0.0
        %487 = vmatpush1.xpose.msra.mxu0 0.0
        %488 = vmatprep.subr.mxu0 0.0
        %489 = vmatpush1.xpose.msra.mxu0 0.0
        %490 = vmatprep.subr.mxu0 0.0
        %491 = vmatpush1.xpose.msra.mxu0 0.0
        %492 = vmatprep.subr.mxu0 0.0
        %493 = vmatpush1.xpose.msra.mxu0 0.0
        %494 = vmatprep.subr.mxu0 0.0
        %495 = vmatpush1.xpose.msra.mxu0 0.0
        %496 = vmatprep.subr.mxu0 0.0
        %497 = vmatpush1.xpose.msra.mxu0 0.0
        %498 = vmatprep.subr.mxu0 0.0
        %499 = vmatpush1.xpose.msra.mxu0 0.0
        %500 = vmatprep.subr.mxu0 0.0
        %501 = vmatpush1.xpose.msra.mxu0 0.0
        %502 = vmatprep.subr.mxu0 0.0
        %503 = vmatpush1.xpose.msra.mxu0 0.0
        %504 = vmatprep.subr.mxu0 0.0
        %505 = vmatpush1.xpose.msra.mxu0 0.0
        %506 = vmatprep.subr.mxu0 0.0
        %507 = vmatpush1.xpose.msra.mxu0 0.0
        %508 = vmatprep.subr.mxu0 0.0
        %509 = vmatpush1.xpose.msra.mxu0 0.0
        %510 = vmatprep.subr.mxu0 0.0
        %511 = vmatpush1.xpose.msra.mxu0 0.0
        %512 = vmatprep.subr.mxu0 0.0
        %513 = vmatpush1.xpose.msra.mxu0 0.0
        %514 = vmatprep.subr.mxu0 0.0
        %515 = vmatpush1.xpose.msra.mxu0 0.0
        %516 = vmatprep.subr.mxu0 0.0
        %517 = vmatpush1.xpose.msra.mxu0 0.0
        %518 = vmatprep.subr.mxu0 0.0
        %519 = vmatpush1.xpose.msra.mxu0 0.0
        %520 = vmatprep.subr.mxu0 0.0
        %521 = vmatpush1.xpose.msra.mxu0 0.0
        %522 = vmatprep.subr.mxu0 0.0
        %523 = vmatpush1.xpose.msra.mxu0 0.0
        %524 = vmatprep.mubr.f32.mxu0 0.0
        %525 = vmatmul.mubr.f32.gmra.mrb[0].mxu0 %v455
        %v526 = vpop.f32.mrb[0].mxu0
        %v527 = vadd.f32 0.0, %v526
        %v528 = vpop.f32.mrb[0].mxu0
        %529 = vdwg.mxu0
        %v530 = vsel %vm225, %v299, -inf
        %531 = vmax.xlane.f32.xlu0 %v530
        %v532 = vpop.xlane.xlu0 %531
        %v533 = vsel %vm225, %v375, -inf
        %534 = vmax.xlane.f32.xlu0 %v533
        %v535 = vpop.xlane.xlu0 %534
        %v536 = vsel %vm225, %v451, -inf
        %537 = vmax.xlane.f32.xlu0 %v536
        %v538 = vpop.xlane.xlu0 %537
        %v539 = vsel %vm225, %v527, -inf
        %540 = vmax.xlane.f32.xlu0 %v539
        %v541 = vpop.xlane.xlu0 %540
        %v542 = vsub.f32 %v299, %v532
        %v543 = vsub.f32 %v375, %v535
        %v544 = vsub.f32 %v451, %v538
        %v545 = vsub.f32 %v527, %v541
        %v546 = vmul.f32 %v542, 1.442695
        %v547 = vpow.pop %v546
        %v548 = vmul.f32 %v543, 1.442695
        %v549 = vpow.pop %v548
        %v550 = vmul.f32 %v544, 1.442695
        %v551 = vpow.pop %v550
        %v552 = vmul.f32 %v545, 1.442695
        %v553 = vpow.pop %v552
        %v554 = vsel %vm225, %v547, 0.0
        %555 = vadd.xlane.f32.xlu0 %v554
        %v556 = vpop.xlane.xlu0 %555
        %v557 = vsel %vm225, %v549, 0.0
        %558 = vadd.xlane.f32.xlu0 %v557
        %v559 = vpop.xlane.xlu0 %558
        %v560 = vsel %vm225, %v551, 0.0
        %561 = vadd.xlane.f32.xlu0 %v560
        %v562 = vpop.xlane.xlu0 %561
        %v563 = vsel %vm225, %v553, 0.0
        %564 = vadd.xlane.f32.xlu0 %v563
        %v565 = vpop.xlane.xlu0 %564
        %v566 = vrcp.pop %v556
        %v567 = vrcp.pop %v559
        %v568 = vrcp.pop %v562
        %v569 = vrcp.pop %v565
        %v570 = vmul.f32 %v547, %v566
        %v571 = vmul.f32 %v549, %v567
        %v572 = vmul.f32 %v551, %v568
        %v573 = vmul.f32 %v553, %v569
        %v575 = vsel %vm225, %v570, 0
        %577 = vmatprep.subr.mxu0 0.0
        %578 = vmatpush1.msra.mxu0 %v221
        %579 = vmatprep.subr.mxu0 0.0
        %580 = vmatpush1.msra.mxu0 0.0
        %581 = vmatprep.subr.mxu0 0.0
        %582 = vmatpush1.msra.mxu0 0.0
        %583 = vmatprep.subr.mxu0 0.0
        %584 = vmatpush1.msra.mxu0 0.0
        %585 = vmatprep.subr.mxu0 0.0
        %586 = vmatpush1.msra.mxu0 0.0
        %587 = vmatprep.subr.mxu0 0.0
        %588 = vmatpush1.msra.mxu0 0.0
        %589 = vmatprep.subr.mxu0 0.0
        %590 = vmatpush1.msra.mxu0 0.0
        %591 = vmatprep.subr.mxu0 0.0
        %592 = vmatpush1.msra.mxu0 0.0
        %593 = vmatprep.subr.mxu0 0.0
        %594 = vmatpush1.msra.mxu0 0.0
        %595 = vmatprep.subr.mxu0 0.0
        %596 = vmatpush1.msra.mxu0 0.0
        %597 = vmatprep.subr.mxu0 0.0
        %598 = vmatpush1.msra.mxu0 0.0
        %599 = vmatprep.subr.mxu0 0.0
        %600 = vmatpush1.msra.mxu0 0.0
        %601 = vmatprep.subr.mxu0 0.0
        %602 = vmatpush1.msra.mxu0 0.0
        %603 = vmatprep.subr.mxu0 0.0
        %604 = vmatpush1.msra.mxu0 0.0
        %605 = vmatprep.subr.mxu0 0.0
        %606 = vmatpush1.msra.mxu0 0.0
        %607 = vmatprep.subr.mxu0 0.0
        %608 = vmatpush1.msra.mxu0 0.0
        %609 = vmatprep.subr.mxu0 0.0
        %610 = vmatpush1.msra.mxu0 0.0
        %611 = vmatprep.subr.mxu0 0.0
        %612 = vmatpush1.msra.mxu0 0.0
        %613 = vmatprep.subr.mxu0 0.0
        %614 = vmatpush1.msra.mxu0 0.0
        %615 = vmatprep.subr.mxu0 0.0
        %616 = vmatpush1.msra.mxu0 0.0
        %617 = vmatprep.subr.mxu0 0.0
        %618 = vmatpush1.msra.mxu0 0.0
        %619 = vmatprep.subr.mxu0 0.0
        %620 = vmatpush1.msra.mxu0 0.0
        %621 = vmatprep.subr.mxu0 0.0
        %622 = vmatpush1.msra.mxu0 0.0
        %623 = vmatprep.subr.mxu0 0.0
        %624 = vmatpush1.msra.mxu0 0.0
        %625 = vmatprep.subr.mxu0 0.0
        %626 = vmatpush1.msra.mxu0 0.0
        %627 = vmatprep.subr.mxu0 0.0
        %628 = vmatpush1.msra.mxu0 0.0
        %629 = vmatprep.subr.mxu0 0.0
        %630 = vmatpush1.msra.mxu0 0.0
        %631 = vmatprep.subr.mxu0 0.0
        %632 = vmatpush1.msra.mxu0 0.0
        %633 = vmatprep.subr.mxu0 0.0
        %634 = vmatpush1.msra.mxu0 0.0
        %635 = vmatprep.subr.mxu0 0.0
        %636 = vmatpush1.msra.mxu0 0.0
        %637 = vmatprep.subr.mxu0 0.0
        %638 = vmatpush1.msra.mxu0 0.0
        %639 = vmatprep.subr.mxu0 0.0
        %640 = vmatpush1.msra.mxu0 0.0
        %641 = vmatprep.mubr.f32.mxu0 0.0
        %642 = vmatmul.mubr.f32.gmra.mrb[0].mxu0 %v575
        %v643 = vpop.f32.mrb[0].mxu0
        %v644 = vadd.f32 0.0, %v643
        %v645 = vpop.f32.mrb[0].mxu0
        %646 = vdwg.mxu0
        %v648 = vsel %vm225, %v571, 0
        %650 = vmatprep.subr.mxu0 0.0
        %651 = vmatpush1.msra.mxu0 %v222
        %652 = vmatprep.subr.mxu0 0.0
        %653 = vmatpush1.msra.mxu0 0.0
        %654 = vmatprep.subr.mxu0 0.0
        %655 = vmatpush1.msra.mxu0 0.0
        %656 = vmatprep.subr.mxu0 0.0
        %657 = vmatpush1.msra.mxu0 0.0
        %658 = vmatprep.subr.mxu0 0.0
        %659 = vmatpush1.msra.mxu0 0.0
        %660 = vmatprep.subr.mxu0 0.0
        %661 = vmatpush1.msra.mxu0 0.0
        %662 = vmatprep.subr.mxu0 0.0
        %663 = vmatpush1.msra.mxu0 0.0
        %664 = vmatprep.subr.mxu0 0.0
        %665 = vmatpush1.msra.mxu0 0.0
        %666 = vmatprep.subr.mxu0 0.0
        %667 = vmatpush1.msra.mxu0 0.0
        %668 = vmatprep.subr.mxu0 0.0
        %669 = vmatpush1.msra.mxu0 0.0
        %670 = vmatprep.subr.mxu0 0.0
        %671 = vmatpush1.msra.mxu0 0.0
        %672 = vmatprep.subr.mxu0 0.0
        %673 = vmatpush1.msra.mxu0 0.0
        %674 = vmatprep.subr.mxu0 0.0
        %675 = vmatpush1.msra.mxu0 0.0
        %676 = vmatprep.subr.mxu0 0.0
        %677 = vmatpush1.msra.mxu0 0.0
        %678 = vmatprep.subr.mxu0 0.0
        %679 = vmatpush1.msra.mxu0 0.0
        %680 = vmatprep.subr.mxu0 0.0
        %681 = vmatpush1.msra.mxu0 0.0
        %682 = vmatprep.subr.mxu0 0.0
        %683 = vmatpush1.msra.mxu0 0.0
        %684 = vmatprep.subr.mxu0 0.0
        %685 = vmatpush1.msra.mxu0 0.0
        %686 = vmatprep.subr.mxu0 0.0
        %687 = vmatpush1.msra.mxu0 0.0
        %688 = vmatprep.subr.mxu0 0.0
        %689 = vmatpush1.msra.mxu0 0.0
        %690 = vmatprep.subr.mxu0 0.0
        %691 = vmatpush1.msra.mxu0 0.0
        %692 = vmatprep.subr.mxu0 0.0
        %693 = vmatpush1.msra.mxu0 0.0
        %694 = vmatprep.subr.mxu0 0.0
        %695 = vmatpush1.msra.mxu0 0.0
        %696 = vmatprep.subr.mxu0 0.0
        %697 = vmatpush1.msra.mxu0 0.0
        %698 = vmatprep.subr.mxu0 0.0
        %699 = vmatpush1.msra.mxu0 0.0
        %700 = vmatprep.subr.mxu0 0.0
        %701 = vmatpush1.msra.mxu0 0.0
        %702 = vmatprep.subr.mxu0 0.0
        %703 = vmatpush1.msra.mxu0 0.0
        %704 = vmatprep.subr.mxu0 0.0
        %705 = vmatpush1.msra.mxu0 0.0
        %706 = vmatprep.subr.mxu0 0.0
        %707 = vmatpush1.msra.mxu0 0.0
        %708 = vmatprep.subr.mxu0 0.0
        %709 = vmatpush1.msra.mxu0 0.0
        %710 = vmatprep.subr.mxu0 0.0
        %711 = vmatpush1.msra.mxu0 0.0
        %712 = vmatprep.subr.mxu0 0.0
        %713 = vmatpush1.msra.mxu0 0.0
        %714 = vmatprep.mubr.f32.mxu0 0.0
        %715 = vmatmul.mubr.f32.gmra.mrb[0].mxu0 %v648
        %v716 = vpop.f32.mrb[0].mxu0
        %v717 = vadd.f32 0.0, %v716
        %v718 = vpop.f32.mrb[0].mxu0
        %719 = vdwg.mxu0
        %v721 = vsel %vm225, %v572, 0
        %723 = vmatprep.subr.mxu0 0.0
        %724 = vmatpush1.msra.mxu0 %v223
        %725 = vmatprep.subr.mxu0 0.0
        %726 = vmatpush1.msra.mxu0 0.0
        %727 = vmatprep.subr.mxu0 0.0
        %728 = vmatpush1.msra.mxu0 0.0
        %729 = vmatprep.subr.mxu0 0.0
        %730 = vmatpush1.msra.mxu0 0.0
        %731 = vmatprep.subr.mxu0 0.0
        %732 = vmatpush1.msra.mxu0 0.0
        %733 = vmatprep.subr.mxu0 0.0
        %734 = vmatpush1.msra.mxu0 0.0
        %735 = vmatprep.subr.mxu0 0.0
        %736 = vmatpush1.msra.mxu0 0.0
        %737 = vmatprep.subr.mxu0 0.0
        %738 = vmatpush1.msra.mxu0 0.0
        %739 = vmatprep.subr.mxu0 0.0
        %740 = vmatpush1.msra.mxu0 0.0
        %741 = vmatprep.subr.mxu0 0.0
        %742 = vmatpush1.msra.mxu0 0.0
        %743 = vmatprep.subr.mxu0 0.0
        %744 = vmatpush1.msra.mxu0 0.0
        %745 = vmatprep.subr.mxu0 0.0
        %746 = vmatpush1.msra.mxu0 0.0
        %747 = vmatprep.subr.mxu0 0.0
        %748 = vmatpush1.msra.mxu0 0.0
        %749 = vmatprep.subr.mxu0 0.0
        %750 = vmatpush1.msra.mxu0 0.0
        %751 = vmatprep.subr.mxu0 0.0
        %752 = vmatpush1.msra.mxu0 0.0
        %753 = vmatprep.subr.mxu0 0.0
        %754 = vmatpush1.msra.mxu0 0.0
        %755 = vmatprep.subr.mxu0 0.0
        %756 = vmatpush1.msra.mxu0 0.0
        %757 = vmatprep.subr.mxu0 0.0
        %758 = vmatpush1.msra.mxu0 0.0
        %759 = vmatprep.subr.mxu0 0.0
        %760 = vmatpush1.msra.mxu0 0.0
        %761 = vmatprep.subr.mxu0 0.0
        %762 = vmatpush1.msra.mxu0 0.0
        %763 = vmatprep.subr.mxu0 0.0
        %764 = vmatpush1.msra.mxu0 0.0
        %765 = vmatprep.subr.mxu0 0.0
        %766 = vmatpush1.msra.mxu0 0.0
        %767 = vmatprep.subr.mxu0 0.0
        %768 = vmatpush1.msra.mxu0 0.0
        %769 = vmatprep.subr.mxu0 0.0
        %770 = vmatpush1.msra.mxu0 0.0
        %771 = vmatprep.subr.mxu0 0.0
        %772 = vmatpush1.msra.mxu0 0.0
        %773 = vmatprep.subr.mxu0 0.0
        %774 = vmatpush1.msra.mxu0 0.0
        %775 = vmatprep.subr.mxu0 0.0
        %776 = vmatpush1.msra.mxu0 0.0
        %777 = vmatprep.subr.mxu0 0.0
        %778 = vmatpush1.msra.mxu0 0.0
        %779 = vmatprep.subr.mxu0 0.0
        %780 = vmatpush1.msra.mxu0 0.0
        %781 = vmatprep.subr.mxu0 0.0
        %782 = vmatpush1.msra.mxu0 0.0
        %783 = vmatprep.subr.mxu0 0.0
        %784 = vmatpush1.msra.mxu0 0.0
        %785 = vmatprep.subr.mxu0 0.0
        %786 = vmatpush1.msra.mxu0 0.0
        %787 = vmatprep.mubr.f32.mxu0 0.0
        %788 = vmatmul.mubr.f32.gmra.mrb[0].mxu0 %v721
        %v789 = vpop.f32.mrb[0].mxu0
        %v790 = vadd.f32 0.0, %v789
        %v791 = vpop.f32.mrb[0].mxu0
        %792 = vdwg.mxu0
        %v794 = vsel %vm225, %v573, 0
        %796 = vmatprep.subr.mxu0 0.0
        %797 = vmatpush1.msra.mxu0 %v224
        %798 = vmatprep.subr.mxu0 0.0
        %799 = vmatpush1.msra.mxu0 0.0
        %800 = vmatprep.subr.mxu0 0.0
        %801 = vmatpush1.msra.mxu0 0.0
        %802 = vmatprep.subr.mxu0 0.0
        %803 = vmatpush1.msra.mxu0 0.0
        %804 = vmatprep.subr.mxu0 0.0
        %805 = vmatpush1.msra.mxu0 0.0
        %806 = vmatprep.subr.mxu0 0.0
        %807 = vmatpush1.msra.mxu0 0.0
        %808 = vmatprep.subr.mxu0 0.0
        %809 = vmatpush1.msra.mxu0 0.0
        %810 = vmatprep.subr.mxu0 0.0
        %811 = vmatpush1.msra.mxu0 0.0
        %812 = vmatprep.subr.mxu0 0.0
        %813 = vmatpush1.msra.mxu0 0.0
        %814 = vmatprep.subr.mxu0 0.0
        %815 = vmatpush1.msra.mxu0 0.0
        %816 = vmatprep.subr.mxu0 0.0
        %817 = vmatpush1.msra.mxu0 0.0
        %818 = vmatprep.subr.mxu0 0.0
        %819 = vmatpush1.msra.mxu0 0.0
        %820 = vmatprep.subr.mxu0 0.0
        %821 = vmatpush1.msra.mxu0 0.0
        %822 = vmatprep.subr.mxu0 0.0
        %823 = vmatpush1.msra.mxu0 0.0
        %824 = vmatprep.subr.mxu0 0.0
        %825 = vmatpush1.msra.mxu0 0.0
        %826 = vmatprep.subr.mxu0 0.0
        %827 = vmatpush1.msra.mxu0 0.0
        %828 = vmatprep.subr.mxu0 0.0
        %829 = vmatpush1.msra.mxu0 0.0
        %830 = vmatprep.subr.mxu0 0.0
        %831 = vmatpush1.msra.mxu0 0.0
        %832 = vmatprep.subr.mxu0 0.0
        %833 = vmatpush1.msra.mxu0 0.0
        %834 = vmatprep.subr.mxu0 0.0
        %835 = vmatpush1.msra.mxu0 0.0
        %836 = vmatprep.subr.mxu0 0.0
        %837 = vmatpush1.msra.mxu0 0.0
        %838 = vmatprep.subr.mxu0 0.0
        %839 = vmatpush1.msra.mxu0 0.0
        %840 = vmatprep.subr.mxu0 0.0
        %841 = vmatpush1.msra.mxu0 0.0
        %842 = vmatprep.subr.mxu0 0.0
        %843 = vmatpush1.msra.mxu0 0.0
        %844 = vmatprep.subr.mxu0 0.0
        %845 = vmatpush1.msra.mxu0 0.0
        %846 = vmatprep.subr.mxu0 0.0
        %847 = vmatpush1.msra.mxu0 0.0
        %848 = vmatprep.subr.mxu0 0.0
        %849 = vmatpush1.msra.mxu0 0.0
        %850 = vmatprep.subr.mxu0 0.0
        %851 = vmatpush1.msra.mxu0 0.0
        %852 = vmatprep.subr.mxu0 0.0
        %853 = vmatpush1.msra.mxu0 0.0
        %854 = vmatprep.subr.mxu0 0.0
        %855 = vmatpush1.msra.mxu0 0.0
        %856 = vmatprep.subr.mxu0 0.0
        %857 = vmatpush1.msra.mxu0 0.0
        %858 = vmatprep.subr.mxu0 0.0
        %859 = vmatpush1.msra.mxu0 0.0
        %860 = vmatprep.mubr.f32.mxu0 0.0
        %861 = vmatmul.mubr.f32.gmra.mrb[0].mxu0 %v794
        %v862 = vpop.f32.mrb[0].mxu0
        %v863 = vadd.f32 0.0, %v862
        %v864 = vpop.f32.mrb[0].mxu0
        %865 = vdwg.mxu0
        %867 = vrot.lane.b32.xlu0 %v717, 8
        %v868 = vpop.permute.xlu0 %867
        %871 = vrot.lane.b32.xlu0 %v790, 16
        %v872 = vpop.permute.xlu0 %871
        %875 = vrot.lane.b32.xlu0 %v863, 24
        %v876 = vpop.permute.xlu0 %875
        %v878 = vsel %vm225, %v644, %v868
        %vm879 = vcmask 130048
        %v880 = vsel %vm879, %v878, %v872
        %vm881 = vcmask 195584
        %v882 = vsel %vm881, %v880, %v876
        %vm883 = vcmask 261120
        %884 = vst.msk [vmem:[%s193] sm:$0xff] %vm883, %v882
        %s885 = sand.u32 %s103, 1
        %s886 = scalar_lea.sflag [#allocation3], %s885
        %s887 = sand.u32 %s103, 1
        %s888 = smul.addr %s887, 8
        %s889 = scalar_lea.vmem [#allocation2], %s888
        // Predicated region
        $region33: #{multi_head_attention.3} parent=31 // pred_check
          %p890 = pneg %p113
        $region34: #{multi_head_attention.3} parent=31 // pred_check_branch
          %892 = sbr.rel (%p890) target = $region36
        $region35: #{multi_head_attention.3} parent=31 // pred_region
          %s894 = ssub.s32 128, 128
          %895 = vsyncadd %s886, %s894
          %s896 = smul.addr %s17, 128
          %s897 = scalar_lea.hbm %s3, %s896
          %s899 = sshll.u32 %s889, 4
          %s900 = int_to_ptr.vmem [resolvable:$true] %s899
          %902 = dma.vmem_to_hbm [thread:$0]  %s900, 128, %s897, %s886
        $region36: #{multi_head_attention.3} parent=31 // pred_fallthru
          _
      $region32: #{multi_head_attention.3} parent=5 // pred_fallthru
        _
      %p903 = scmp.le.s32.totalorder 2, %s12
      // Predicated region
      $region37: #{multi_head_attention.3} parent=5 // pred_check
        %p904 = pneg %p903
      $region38: #{multi_head_attention.3} parent=5 // pred_check_branch
        %906 = sbr.rel (%p904) target = $region40
      $region39: #{multi_head_attention.3} parent=5 // pred_region
        %s907 = ssub.s32 %s12, 2
        // Predicated region
        $region41: #{multi_head_attention.3} parent=39 // pred_check
          %p908 = pneg %p119
        $region42: #{multi_head_attention.3} parent=39 // pred_check_branch
          %910 = sbr.rel (%p908) target = $region44
        $region43: #{multi_head_attention.3} parent=39 // pred_region
          %s911 = sand.u32 %s104, 1
          %s912 = scalar_lea.sflag [#allocation3], %s911
          %s913 = sand.u32 %s104, 1
          %s914 = smul.addr %s913, 8
          %s915 = scalar_lea.vmem [#allocation2], %s914
          %916 = dma.done %s912, 128
        $region44: #{multi_head_attention.3} parent=39 // pred_fallthru
          _
      $region40: #{multi_head_attention.3} parent=5 // pred_fallthru
        _
    $region6: #{multi_head_attention.3} parent=1 // loop_footer
      %s16 = sadd.s32 1, %s12
    $region7: #{multi_head_attention.3} parent=1 // loop_footer_branch
      %11 = sbr.rel target = $region3
    $region8: #{multi_head_attention.3} parent=1 // loop_exit
      _
    %917 = vsyncpa [#allocation3], 1
    %s918 = scalar_lea.sflag [#allocation3], 1
    %919 = vsyncpa %s918, 1

</llo_original>
